<compile_context>
chip_gen: v7x
topology: tpu7x:2x2x1
jax: 0.10.0
libtpu: 0.0.40
codegen_flags: <defaults>
</compile_context>

<pallas_src>
from functools import partial
from math import sqrt

import jax
import jax.numpy as jnp
from jax import lax
from jax.experimental import pallas as pl
from jax.experimental.pallas import tpu as pltpu

# Finite "-inf": exp(-1e30 - m) underflows to exactly 0 for any realistic
# finite m, matching the reference without NaN corner cases.
_NEG_INF = -1e30


def _flash_attention_kernel(q_ref, k_ref, v_ref, o_ref, m_ref, l_ref, acc_ref,
                            *, scale, mask_flag, num_heads, e_dim, d_dim,
                            tq, tk, num_kv):
    """One (batch, q-tile, kv-tile) grid step; all heads folded into lanes.

    q_ref: (1, tq, H*E)   k_ref: (1, tk, H*E)   v_ref: (1, tk, H*D)
    o_ref: (1, tq, H*D)
    scratch: m_ref, l_ref (H, tq, 1) f32 ; acc_ref (tq, H*D) f32
    """
    # program_id only at top level (never inside pl.when branches): required
    # for the interpret/CPU fallback and harmless on real TPU.
    qi = pl.program_id(1)
    ki = pl.program_id(2)

    @pl.when(ki == 0)
    def _init():
        m_ref[...] = jnp.full(m_ref.shape, _NEG_INF, dtype=m_ref.dtype)
        l_ref[...] = jnp.zeros(l_ref.shape, dtype=l_ref.dtype)
        acc_ref[...] = jnp.zeros(acc_ref.shape, dtype=acc_ref.dtype)

    def _make_tile(masked):
        def _tile():
            if masked:
                # Only diagonal tiles pay for the mask (iota/compare/select).
                row = qi * tq + lax.broadcasted_iota(jnp.int32, (tq, tk), 0)
                col = ki * tk + lax.broadcasted_iota(jnp.int32, (tq, tk), 1)
                allowed = col <= row

            alpha_blocks = []
            pv_blocks = []
            for h in range(num_heads):           # static unroll; H is small
                # Ref slices are free views; loads stay per-head (small live
                # set across the unrolled loop, no whole-block spills).
                q_h = q_ref[0, :, h * e_dim:(h + 1) * e_dim] * scale  # (tq,E)
                k_h = k_ref[0, :, h * e_dim:(h + 1) * e_dim]          # (tk,E)
                v_h = v_ref[0, :, h * d_dim:(h + 1) * d_dim]          # (tk,D)

                # scores[l, s] = sum_e q[l, e] * k[s, e]: contract last dims,
                # no explicit K transpose.
                s = lax.dot_general(
                    q_h, k_h,
                    dimension_numbers=(((1,), (1,)), ((), ())),
                    preferred_element_type=jnp.float32)               # (tq,tk)
                if masked:
                    s = jnp.where(allowed, s, _NEG_INF)

                # Online softmax: accumulate unnormalized, normalize at end.
                m_prev = m_ref[h]                                     # (tq,1)
                m_new = jnp.maximum(m_prev, jnp.max(s, axis=-1, keepdims=True))
                alpha = jnp.exp(m_prev - m_new)                       # (tq,1)
                p = jnp.exp(s - m_new)                                # (tq,tk)

                l_ref[h] = alpha * l_ref[h] + jnp.sum(p, axis=-1, keepdims=True)
                m_ref[h] = m_new

                pv = jnp.dot(p.astype(v_h.dtype), v_h,
                             preferred_element_type=jnp.float32)      # (tq,D)
                alpha_blocks.append(jnp.broadcast_to(alpha, (tq, d_dim)))
                pv_blocks.append(pv)

            # Lane-dense accumulator update: one full-width (tq, H*D)
            # read-modify-write per kv step instead of H masked 32-lane RMWs.
            alpha_full = jnp.concatenate(alpha_blocks, axis=-1)       # (tq,H*D)
            pv_full = jnp.concatenate(pv_blocks, axis=-1)             # (tq,H*D)
            acc_ref[...] = alpha_full * acc_ref[...] + pv_full
        return _tile

    if mask_flag:
        # Interior tiles (strictly below the diagonal): no mask work at all.
        pl.when(ki < qi)(_make_tile(masked=False))
        # Diagonal tile: the only one that needs the triangular mask.
        pl.when(ki == qi)(_make_tile(masked=True))
        # ki > qi: fully masked -> skipped entirely (DMA clamped in wrapper).
    else:
        _make_tile(masked=False)()

    @pl.when(ki == num_kv - 1)
    def _finalize():
        # Deferred normalization + single unmasked full-width output store.
        inv_blocks = [jnp.broadcast_to(1.0 / l_ref[h], (tq, d_dim))
                      for h in range(num_heads)]
        inv_full = jnp.concatenate(inv_blocks, axis=-1)               # (tq,H*D)
        o_ref[0] = (acc_ref[...] * inv_full).astype(o_ref.dtype)


def _pick_tile(n, cap):
    """Largest tile <= cap that divides n and is a multiple of 8 (sublane),
    falling back to the full extent (always a legal block dimension)."""
    if n <= cap:
        return n
    for t in range(cap - cap % 8, 7, -8):
        if n % t == 0:
            return t
    return n


def full_attention(queries, keys, values, *, mask_flag=True, scale=None,
                   q_tile_cap=256, kv_tile_cap=512):
    """queries (B,L,H,E), keys (B,S,H,E), values (B,S,H,D) -> (B,L,H,D)."""
    B, L, H, E = queries.shape
    _, S, _, D = values.shape
    scale = float(scale) if scale is not None else 1.0 / sqrt(E)

    if mask_flag and L != S:
        raise ValueError("TriangularCausalMask semantics require L == S.")

    tq = _pick_tile(L, q_tile_cap)
    # v7x megacore: keep at least 2 'parallel' grid steps so both TensorCores
    # get work (only bites when B == 1 with a single q tile).
    while B * (L // tq) < 2 and tq % 16 == 0 and L % (tq // 2) == 0:
        tq //= 2
    # Aligned q/kv tiles in the causal case guarantee every computed row has
    # at least one unmasked column and make the diagonal-block test exact.
    tk = tq if mask_flag else _pick_tile(S, kv_tile_cap)

    # Heads folded into the lane dim: a free, contiguous reshape -- no
    # transpose passes over HBM, lane-dense (H*E / H*D)-wide blocks.
    q3 = queries.reshape(B, L, H * E)
    k3 = keys.reshape(B, S, H * E)
    v3 = values.reshape(B, S, H * D)

    grid = (B, L // tq, S // tk)
    num_kv = S // tk

    def q_map(b, qi, ki):
        return (b, qi, 0)

    if mask_flag:
        def kv_map(b, qi, ki):
            # Clamp above-diagonal kv tiles to the diagonal block (tq == tk):
            # those steps do no compute and the repeated block index avoids
            # any re-DMA for them.
            return (b, jnp.minimum(ki, qi), 0)
    else:
        def kv_map(b, qi, ki):
            return (b, ki, 0)

    kernel = partial(_flash_attention_kernel, scale=scale, mask_flag=mask_flag,
                     num_heads=H, e_dim=E, d_dim=D, tq=tq, tk=tk, num_kv=num_kv)

    out = pl.pallas_call(
        kernel,
        out_shape=jax.ShapeDtypeStruct((B, L, H * D), queries.dtype),
        grid_spec=pltpu.PrefetchScalarGridSpec(
            num_scalar_prefetch=0,
            grid=grid,
            in_specs=[
                pl.BlockSpec((1, tq, H * E), q_map),   # Q resident across kv
                pl.BlockSpec((1, tk, H * E), kv_map),  # K
                pl.BlockSpec((1, tk, H * D), kv_map),  # V
            ],
            out_specs=pl.BlockSpec((1, tq, H * D), q_map),
            scratch_shapes=[
                pltpu.VMEM((H, tq, 1), jnp.float32),   # running max  m
                pltpu.VMEM((H, tq, 1), jnp.float32),   # running sum  l
                pltpu.VMEM((tq, H * D), jnp.float32),  # unnormalized out acc
            ]),
        compiler_params=pltpu.CompilerParams(
            dimension_semantics=("parallel", "parallel", "arbitrary")),
    )(q3, k3, v3)

    return out.reshape(B, L, H, D)


def _reference(queries, keys, values, *, mask_flag=True, scale=None):
    B, L, H, E = queries.shape
    scale = scale or 1.0 / sqrt(E)
    scores = jnp.einsum('blhe,bshe->bhls', queries, keys)
    if mask_flag:
        Lq, S = scores.shape[-2:]
        mask = jnp.triu(jnp.ones((Lq, S), dtype=bool), k=1)
        scores = jnp.where(mask[None, None], -jnp.inf, scores)
    A = jax.nn.softmax(scale * scores, axis=-1)
    return jnp.einsum('bhls,bshd->blhd', A, values)


if __name__ == "__main__":
    root = jax.random.PRNGKey(0)

    # Small shapes consistent with the module's forward (B, L, H, E).
    B, L, H, E, D = 2, 8, 4, 32, 32
    kq, kk, kv = jax.random.split(root, 3)
    queries = jax.random.normal(kq, (B, L, H, E), dtype=jnp.float32)
    keys_ = jax.random.normal(kk, (B, L, H, E), dtype=jnp.float32)
    values = jax.random.normal(kv, (B, L, H, D), dtype=jnp.float32)

    out = jax.block_until_ready(full_attention(queries, keys_, values, mask_flag=True))
    ref = _reference(queries, keys_, values, mask_flag=True)
    assert out.shape == (B, L, H, D)
    assert jnp.allclose(out, ref, atol=1e-4, rtol=1e-4), "small causal mismatch"

    # Longer sequence with forced small tiles: exercises the online softmax
    # across kv tiles, interior/diagonal mask paths, accumulator carry and the
    # clamped (no re-DMA) K/V index_map.
    B2, L2, H2, E2, D2 = 2, 256, 4, 32, 32
    k2q, k2k, k2v = jax.random.split(jax.random.PRNGKey(1), 3)
    q2 = jax.random.normal(k2q, (B2, L2, H2, E2), dtype=jnp.float32)
    k2 = jax.random.normal(k2k, (B2, L2, H2, E2), dtype=jnp.float32)
    v2 = jax.random.normal(k2v, (B2, L2, H2, D2), dtype=jnp.float32)

    out2 = jax.block_until_ready(
        full_attention(q2, k2, v2, mask_flag=True, q_tile_cap=64, kv_tile_cap=64))
    ref2 = _reference(q2, k2, v2, mask_flag=True)
    assert jnp.allclose(out2, ref2, atol=1e-4, rtol=1e-4), "tiled causal mismatch"

    out3 = jax.block_until_ready(
        full_attention(q2, k2, v2, mask_flag=False, q_tile_cap=64, kv_tile_cap=128))
    ref3 = _reference(q2, k2, v2, mask_flag=False)
    assert jnp.allclose(out3, ref3, atol=1e-4, rtol=1e-4), "non-causal mismatch"

    print("KERNEL_OK")
</pallas_src>

<mosaic_0001>
module attributes {stable_mosaic.version = 11 : i64} {
  func.func @_flash_attention_kernel(%arg0: i32, %arg1: i32, %arg2: i32, %arg3: memref<1x8x128xf32, #tpu.memory_space<vmem>>, %arg4: memref<1x8x128xf32, #tpu.memory_space<vmem>>, %arg5: memref<1x8x128xf32, #tpu.memory_space<vmem>>, %arg6: memref<1x8x128xf32, #tpu.memory_space<vmem>>, %arg7: memref<4x8x1xf32, #tpu.memory_space<vmem>>, %arg8: memref<4x8x1xf32, #tpu.memory_space<vmem>>, %arg9: memref<8x128xf32, #tpu.memory_space<vmem>>) attributes {dimension_semantics = [#tpu.dimension_semantics<parallel>, #tpu.dimension_semantics<parallel>, #tpu.dimension_semantics<arbitrary>], iteration_bounds = array<i64: 2, 1, 1>, scalar_prefetch = 0 : i64, scratch_operands = 3 : i64, tpu.core_type = #tpu.core_type<tc>, window_params = [{transform_indices = @transform_0, window_bounds = array<i64: 1, 8, 128>}, {transform_indices = @transform_1, window_bounds = array<i64: 1, 8, 128>}, {transform_indices = @transform_2, window_bounds = array<i64: 1, 8, 128>}, {transform_indices = @transform_3, window_bounds = array<i64: 1, 8, 128>}]} {
    %c0_i32 = arith.constant 0 : i32
    %0 = arith.cmpi eq, %arg2, %c0_i32 : i32
    %1 = arith.extui %0 : i1 to i32
    %c0_i32_0 = arith.constant 0 : i32
    %2 = arith.cmpi ne, %1, %c0_i32_0 : i32
    scf.if %2 {
      %cst = arith.constant -1.000000e+30 : f32
      %12 = vector.broadcast %cst : f32 to vector<4x8x1xf32>
      %c0 = arith.constant 0 : index
      %c0_5 = arith.constant 0 : index
      %c0_6 = arith.constant 0 : index
      %13 = vector.load %arg7[%c0, %c0_5, %c0_6] : memref<4x8x1xf32, #tpu.memory_space<vmem>>, vector<4x8x1xf32>
      tpu.vector_store %arg7[%c0, %c0_5, %c0_6], %12 {strides = array<i32>} : memref<4x8x1xf32, #tpu.memory_space<vmem>>, vector<4x8x1xf32>,
      %cst_7 = arith.constant 0.000000e+00 : f32
      %14 = vector.broadcast %cst_7 : f32 to vector<4x8x1xf32>
      %c0_8 = arith.constant 0 : index
      %c0_9 = arith.constant 0 : index
      %c0_10 = arith.constant 0 : index
      %15 = vector.load %arg8[%c0_8, %c0_9, %c0_10] : memref<4x8x1xf32, #tpu.memory_space<vmem>>, vector<4x8x1xf32>
      tpu.vector_store %arg8[%c0_8, %c0_9, %c0_10], %14 {strides = array<i32>} : memref<4x8x1xf32, #tpu.memory_space<vmem>>, vector<4x8x1xf32>,
      %cst_11 = arith.constant 0.000000e+00 : f32
      %16 = vector.broadcast %cst_11 : f32 to vector<8x128xf32>
      %c0_12 = arith.constant 0 : index
      %c0_13 = arith.constant 0 : index
      %17 = vector.load %arg9[%c0_12, %c0_13] : memref<8x128xf32, #tpu.memory_space<vmem>>, vector<8x128xf32>
      tpu.vector_store %arg9[%c0_12, %c0_13], %16 {strides = array<i32>} : memref<8x128xf32, #tpu.memory_space<vmem>>, vector<8x128xf32>,
    } else {
    }
    %3 = arith.cmpi slt, %arg2, %arg1 : i32
    %4 = arith.extui %3 : i1 to i32
    %c0_i32_1 = arith.constant 0 : i32
    %5 = arith.cmpi ne, %4, %c0_i32_1 : i32
    scf.if %5 {
      %c0 = arith.constant 0 : index
      %c0_5 = arith.constant 0 : index
      %c0_6 = arith.constant 0 : index
      %12 = vector.load %arg3[%c0, %c0_5, %c0_6] : memref<1x8x128xf32, #tpu.memory_space<vmem>>, vector<1x8x32xf32>
      %13 = vector.shape_cast %12 : vector<1x8x32xf32> to vector<8x32xf32>
      %cst = arith.constant 0.176776692 : f32
      %14 = vector.broadcast %cst : f32 to vector<8x32xf32>
      %15 = arith.mulf %13, %14 : vector<8x32xf32>
      %c0_7 = arith.constant 0 : index
      %c0_8 = arith.constant 0 : index
      %c0_9 = arith.constant 0 : index
      %16 = vector.load %arg4[%c0_7, %c0_8, %c0_9] : memref<1x8x128xf32, #tpu.memory_space<vmem>>, vector<1x8x32xf32>
      %17 = vector.shape_cast %16 : vector<1x8x32xf32> to vector<8x32xf32>
      %c0_10 = arith.constant 0 : index
      %c0_11 = arith.constant 0 : index
      %c0_12 = arith.constant 0 : index
      %18 = vector.load %arg5[%c0_10, %c0_11, %c0_12] : memref<1x8x128xf32, #tpu.memory_space<vmem>>, vector<1x8x32xf32>
      %19 = vector.shape_cast %18 : vector<1x8x32xf32> to vector<8x32xf32>
      %cst_13 = arith.constant dense<0.000000e+00> : vector<8x8xf32>
      %20 = tpu.matmul %15, %17, %cst_13 {dimension_numbers = #tpu.dot_dimension_numbers<[1], [1], [0], [0], [0, 0, 1, 0], [], []>} : vector<8x32xf32>, vector<8x32xf32>, vector<8x8xf32> -> vector<8x8xf32>
      %c0_14 = arith.constant 0 : index
      %c0_15 = arith.constant 0 : index
      %c0_16 = arith.constant 0 : index
      %21 = vector.load %arg7[%c0_14, %c0_15, %c0_16] : memref<4x8x1xf32, #tpu.memory_space<vmem>>, vector<1x8x1xf32>
      %22 = vector.shape_cast %21 : vector<1x8x1xf32> to vector<8x1xf32>
      %cst_17 = arith.constant dense<0xFF800000> : vector<8xf32>
      %23 = vector.multi_reduction <maximumf>, %20, %cst_17 [1] : vector<8x8xf32> to vector<8xf32>
      %24 = vector.shape_cast %23 : vector<8xf32> to vector<8x1xf32>
      %25 = arith.maximumf %22, %24 : vector<8x1xf32>
      %26 = arith.subf %22, %25 : vector<8x1xf32>
      %27 = math.exp %26 : vector<8x1xf32>
      %28 = vector.broadcast %25 : vector<8x1xf32> to vector<8x8xf32>
      %29 = arith.subf %20, %28 : vector<8x8xf32>
      %30 = math.exp %29 : vector<8x8xf32>
      %c0_18 = arith.constant 0 : index
      %c0_19 = arith.constant 0 : index
      %c0_20 = arith.constant 0 : index
      %31 = vector.load %arg8[%c0_18, %c0_19, %c0_20] : memref<4x8x1xf32, #tpu.memory_space<vmem>>, vector<1x8x1xf32>
      %32 = vector.shape_cast %31 : vector<1x8x1xf32> to vector<8x1xf32>
      %33 = arith.mulf %27, %32 : vector<8x1xf32>
      %cst_21 = arith.constant dense<0.000000e+00> : vector<8xf32>
      %34 = vector.multi_reduction <add>, %30, %cst_21 [1] : vector<8x8xf32> to vector<8xf32>
      %35 = vector.shape_cast %34 : vector<8xf32> to vector<8x1xf32>
      %36 = arith.addf %33, %35 : vector<8x1xf32>
      %c0_22 = arith.constant 0 : index
      %c0_23 = arith.constant 0 : index
      %c0_24 = arith.constant 0 : index
      %37 = vector.load %arg8[%c0_22, %c0_23, %c0_24] : memref<4x8x1xf32, #tpu.memory_space<vmem>>, vector<1x8x1xf32>
      %38 = vector.shape_cast %37 : vector<1x8x1xf32> to vector<8x1xf32>
      %39 = vector.shape_cast %36 : vector<8x1xf32> to vector<1x8x1xf32>
      tpu.vector_store %arg8[%c0_22, %c0_23, %c0_24], %39 {strides = array<i32>} : memref<4x8x1xf32, #tpu.memory_space<vmem>>, vector<1x8x1xf32>,
      %c0_25 = arith.constant 0 : index
      %c0_26 = arith.constant 0 : index
      %c0_27 = arith.constant 0 : index
      %40 = vector.load %arg7[%c0_25, %c0_26, %c0_27] : memref<4x8x1xf32, #tpu.memory_space<vmem>>, vector<1x8x1xf32>
      %41 = vector.shape_cast %40 : vector<1x8x1xf32> to vector<8x1xf32>
      %42 = vector.shape_cast %25 : vector<8x1xf32> to vector<1x8x1xf32>
      tpu.vector_store %arg7[%c0_25, %c0_26, %c0_27], %42 {strides = array<i32>} : memref<4x8x1xf32, #tpu.memory_space<vmem>>, vector<1x8x1xf32>,
      %cst_28 = arith.constant dense<0.000000e+00> : vector<8x32xf32>
      %43 = tpu.matmul %30, %19, %cst_28 {dimension_numbers = #tpu.dot_dimension_numbers<[1], [0], [0], [1], [0, 0, 1, 1], [], []>} : vector<8x8xf32>, vector<8x32xf32>, vector<8x32xf32> -> vector<8x32xf32>
      %44 = vector.shape_cast %27 : vector<8x1xf32> to vector<8x1xf32>
      %45 = vector.broadcast %44 : vector<8x1xf32> to vector<8x32xf32>
      %c0_29 = arith.constant 0 : index
      %c0_30 = arith.constant 0 : index
      %c32 = arith.constant 32 : index
      %46 = vector.load %arg3[%c0_29, %c0_30, %c32] : memref<1x8x128xf32, #tpu.memory_space<vmem>>, vector<1x8x32xf32>
      %47 = vector.shape_cast %46 : vector<1x8x32xf32> to vector<8x32xf32>
      %cst_31 = arith.constant 0.176776692 : f32
      %48 = vector.broadcast %cst_31 : f32 to vector<8x32xf32>
      %49 = arith.mulf %47, %48 : vector<8x32xf32>
      %c0_32 = arith.constant 0 : index
      %c0_33 = arith.constant 0 : index
      %c32_34 = arith.constant 32 : index
      %50 = vector.load %arg4[%c0_32, %c0_33, %c32_34] : memref<1x8x128xf32, #tpu.memory_space<vmem>>, vector<1x8x32xf32>
      %51 = vector.shape_cast %50 : vector<1x8x32xf32> to vector<8x32xf32>
      %c0_35 = arith.constant 0 : index
      %c0_36 = arith.constant 0 : index
      %c32_37 = arith.constant 32 : index
      %52 = vector.load %arg5[%c0_35, %c0_36, %c32_37] : memref<1x8x128xf32, #tpu.memory_space<vmem>>, vector<1x8x32xf32>
      %53 = vector.shape_cast %52 : vector<1x8x32xf32> to vector<8x32xf32>
      %cst_38 = arith.constant dense<0.000000e+00> : vector<8x8xf32>
      %54 = tpu.matmul %49, %51, %cst_38 {dimension_numbers = #tpu.dot_dimension_numbers<[1], [1], [0], [0], [0, 0, 1, 0], [], []>} : vector<8x32xf32>, vector<8x32xf32>, vector<8x8xf32> -> vector<8x8xf32>
      %c1 = arith.constant 1 : index
      %c0_39 = arith.constant 0 : index
      %c0_40 = arith.constant 0 : index
      %55 = vector.load %arg7[%c1, %c0_39, %c0_40] : memref<4x8x1xf32, #tpu.memory_space<vmem>>, vector<1x8x1xf32>
      %56 = vector.shape_cast %55 : vector<1x8x1xf32> to vector<8x1xf32>
      %cst_41 = arith.constant dense<0xFF800000> : vector<8xf32>
      %57 = vector.multi_reduction <maximumf>, %54, %cst_41 [1] : vector<8x8xf32> to vector<8xf32>
      %58 = vector.shape_cast %57 : vector<8xf32> to vector<8x1xf32>
      %59 = arith.maximumf %56, %58 : vector<8x1xf32>
      %60 = arith.subf %56, %59 : vector<8x1xf32>
      %61 = math.exp %60 : vector<8x1xf32>
      %62 = vector.broadcast %59 : vector<8x1xf32> to vector<8x8xf32>
      %63 = arith.subf %54, %62 : vector<8x8xf32>
      %64 = math.exp %63 : vector<8x8xf32>
      %c1_42 = arith.constant 1 : index
      %c0_43 = arith.constant 0 : index
      %c0_44 = arith.constant 0 : index
      %65 = vector.load %arg8[%c1_42, %c0_43, %c0_44] : memref<4x8x1xf32, #tpu.memory_space<vmem>>, vector<1x8x1xf32>
      %66 = vector.shape_cast %65 : vector<1x8x1xf32> to vector<8x1xf32>
      %67 = arith.mulf %61, %66 : vector<8x1xf32>
      %cst_45 = arith.constant dense<0.000000e+00> : vector<8xf32>
      %68 = vector.multi_reduction <add>, %64, %cst_45 [1] : vector<8x8xf32> to vector<8xf32>
      %69 = vector.shape_cast %68 : vector<8xf32> to vector<8x1xf32>
      %70 = arith.addf %67, %69 : vector<8x1xf32>
      %c1_46 = arith.constant 1 : index
      %c0_47 = arith.constant 0 : index
      %c0_48 = arith.constant 0 : index
      %71 = vector.load %arg8[%c1_46, %c0_47, %c0_48] : memref<4x8x1xf32, #tpu.memory_space<vmem>>, vector<1x8x1xf32>
      %72 = vector.shape_cast %71 : vector<1x8x1xf32> to vector<8x1xf32>
      %73 = vector.shape_cast %70 : vector<8x1xf32> to vector<1x8x1xf32>
      tpu.vector_store %arg8[%c1_46, %c0_47, %c0_48], %73 {strides = array<i32>} : memref<4x8x1xf32, #tpu.memory_space<vmem>>, vector<1x8x1xf32>,
      %c1_49 = arith.constant 1 : index
      %c0_50 = arith.constant 0 : index
      %c0_51 = arith.constant 0 : index
      %74 = vector.load %arg7[%c1_49, %c0_50, %c0_51] : memref<4x8x1xf32, #tpu.memory_space<vmem>>, vector<1x8x1xf32>
      %75 = vector.shape_cast %74 : vector<1x8x1xf32> to vector<8x1xf32>
      %76 = vector.shape_cast %59 : vector<8x1xf32> to vector<1x8x1xf32>
      tpu.vector_store %arg7[%c1_49, %c0_50, %c0_51], %76 {strides = array<i32>} : memref<4x8x1xf32, #tpu.memory_space<vmem>>, vector<1x8x1xf32>,
      %cst_52 = arith.constant dense<0.000000e+00> : vector<8x32xf32>
      %77 = tpu.matmul %64, %53, %cst_52 {dimension_numbers = #tpu.dot_dimension_numbers<[1], [0], [0], [1], [0, 0, 1, 1], [], []>} : vector<8x8xf32>, vector<8x32xf32>, vector<8x32xf32> -> vector<8x32xf32>
      %78 = vector.shape_cast %61 : vector<8x1xf32> to vector<8x1xf32>
      %79 = vector.broadcast %78 : vector<8x1xf32> to vector<8x32xf32>
      %c0_53 = arith.constant 0 : index
      %c0_54 = arith.constant 0 : index
      %c64 = arith.constant 64 : index
      %80 = vector.load %arg3[%c0_53, %c0_54, %c64] : memref<1x8x128xf32, #tpu.memory_space<vmem>>, vector<1x8x32xf32>
      %81 = vector.shape_cast %80 : vector<1x8x32xf32> to vector<8x32xf32>
      %cst_55 = arith.constant 0.176776692 : f32
      %82 = vector.broadcast %cst_55 : f32 to vector<8x32xf32>
      %83 = arith.mulf %81, %82 : vector<8x32xf32>
      %c0_56 = arith.constant 0 : index
      %c0_57 = arith.constant 0 : index
      %c64_58 = arith.constant 64 : index
      %84 = vector.load %arg4[%c0_56, %c0_57, %c64_58] : memref<1x8x128xf32, #tpu.memory_space<vmem>>, vector<1x8x32xf32>
      %85 = vector.shape_cast %84 : vector<1x8x32xf32> to vector<8x32xf32>
      %c0_59 = arith.constant 0 : index
      %c0_60 = arith.constant 0 : index
      %c64_61 = arith.constant 64 : index
      %86 = vector.load %arg5[%c0_59, %c0_60, %c64_61] : memref<1x8x128xf32, #tpu.memory_space<vmem>>, vector<1x8x32xf32>
      %87 = vector.shape_cast %86 : vector<1x8x32xf32> to vector<8x32xf32>
      %cst_62 = arith.constant dense<0.000000e+00> : vector<8x8xf32>
      %88 = tpu.matmul %83, %85, %cst_62 {dimension_numbers = #tpu.dot_dimension_numbers<[1], [1], [0], [0], [0, 0, 1, 0], [], []>} : vector<8x32xf32>, vector<8x32xf32>, vector<8x8xf32> -> vector<8x8xf32>
      %c2 = arith.constant 2 : index
      %c0_63 = arith.constant 0 : index
      %c0_64 = arith.constant 0 : index
      %89 = vector.load %arg7[%c2, %c0_63, %c0_64] : memref<4x8x1xf32, #tpu.memory_space<vmem>>, vector<1x8x1xf32>
      %90 = vector.shape_cast %89 : vector<1x8x1xf32> to vector<8x1xf32>
      %cst_65 = arith.constant dense<0xFF800000> : vector<8xf32>
      %91 = vector.multi_reduction <maximumf>, %88, %cst_65 [1] : vector<8x8xf32> to vector<8xf32>
      %92 = vector.shape_cast %91 : vector<8xf32> to vector<8x1xf32>
      %93 = arith.maximumf %90, %92 : vector<8x1xf32>
      %94 = arith.subf %90, %93 : vector<8x1xf32>
      %95 = math.exp %94 : vector<8x1xf32>
      %96 = vector.broadcast %93 : vector<8x1xf32> to vector<8x8xf32>
      %97 = arith.subf %88, %96 : vector<8x8xf32>
      %98 = math.exp %97 : vector<8x8xf32>
      %c2_66 = arith.constant 2 : index
      %c0_67 = arith.constant 0 : index
      %c0_68 = arith.constant 0 : index
      %99 = vector.load %arg8[%c2_66, %c0_67, %c0_68] : memref<4x8x1xf32, #tpu.memory_space<vmem>>, vector<1x8x1xf32>
      %100 = vector.shape_cast %99 : vector<1x8x1xf32> to vector<8x1xf32>
      %101 = arith.mulf %95, %100 : vector<8x1xf32>
      %cst_69 = arith.constant dense<0.000000e+00> : vector<8xf32>
      %102 = vector.multi_reduction <add>, %98, %cst_69 [1] : vector<8x8xf32> to vector<8xf32>
      %103 = vector.shape_cast %102 : vector<8xf32> to vector<8x1xf32>
      %104 = arith.addf %101, %103 : vector<8x1xf32>
      %c2_70 = arith.constant 2 : index
      %c0_71 = arith.constant 0 : index
      %c0_72 = arith.constant 0 : index
      %105 = vector.load %arg8[%c2_70, %c0_71, %c0_72] : memref<4x8x1xf32, #tpu.memory_space<vmem>>, vector<1x8x1xf32>
      %106 = vector.shape_cast %105 : vector<1x8x1xf32> to vector<8x1xf32>
      %107 = vector.shape_cast %104 : vector<8x1xf32> to vector<1x8x1xf32>
      tpu.vector_store %arg8[%c2_70, %c0_71, %c0_72], %107 {strides = array<i32>} : memref<4x8x1xf32, #tpu.memory_space<vmem>>, vector<1x8x1xf32>,
      %c2_73 = arith.constant 2 : index
      %c0_74 = arith.constant 0 : index
      %c0_75 = arith.constant 0 : index
      %108 = vector.load %arg7[%c2_73, %c0_74, %c0_75] : memref<4x8x1xf32, #tpu.memory_space<vmem>>, vector<1x8x1xf32>
      %109 = vector.shape_cast %108 : vector<1x8x1xf32> to vector<8x1xf32>
      %110 = vector.shape_cast %93 : vector<8x1xf32> to vector<1x8x1xf32>
      tpu.vector_store %arg7[%c2_73, %c0_74, %c0_75], %110 {strides = array<i32>} : memref<4x8x1xf32, #tpu.memory_space<vmem>>, vector<1x8x1xf32>,
      %cst_76 = arith.constant dense<0.000000e+00> : vector<8x32xf32>
      %111 = tpu.matmul %98, %87, %cst_76 {dimension_numbers = #tpu.dot_dimension_numbers<[1], [0], [0], [1], [0, 0, 1, 1], [], []>} : vector<8x8xf32>, vector<8x32xf32>, vector<8x32xf32> -> vector<8x32xf32>
      %112 = vector.shape_cast %95 : vector<8x1xf32> to vector<8x1xf32>
      %113 = vector.broadcast %112 : vector<8x1xf32> to vector<8x32xf32>
      %c0_77 = arith.constant 0 : index
      %c0_78 = arith.constant 0 : index
      %c96 = arith.constant 96 : index
      %114 = vector.load %arg3[%c0_77, %c0_78, %c96] : memref<1x8x128xf32, #tpu.memory_space<vmem>>, vector<1x8x32xf32>
      %115 = vector.shape_cast %114 : vector<1x8x32xf32> to vector<8x32xf32>
      %cst_79 = arith.constant 0.176776692 : f32
      %116 = vector.broadcast %cst_79 : f32 to vector<8x32xf32>
      %117 = arith.mulf %115, %116 : vector<8x32xf32>
      %c0_80 = arith.constant 0 : index
      %c0_81 = arith.constant 0 : index
      %c96_82 = arith.constant 96 : index
      %118 = vector.load %arg4[%c0_80, %c0_81, %c96_82] : memref<1x8x128xf32, #tpu.memory_space<vmem>>, vector<1x8x32xf32>
      %119 = vector.shape_cast %118 : vector<1x8x32xf32> to vector<8x32xf32>
      %c0_83 = arith.constant 0 : index
      %c0_84 = arith.constant 0 : index
      %c96_85 = arith.constant 96 : index
      %120 = vector.load %arg5[%c0_83, %c0_84, %c96_85] : memref<1x8x128xf32, #tpu.memory_space<vmem>>, vector<1x8x32xf32>
      %121 = vector.shape_cast %120 : vector<1x8x32xf32> to vector<8x32xf32>
      %cst_86 = arith.constant dense<0.000000e+00> : vector<8x8xf32>
      %122 = tpu.matmul %117, %119, %cst_86 {dimension_numbers = #tpu.dot_dimension_numbers<[1], [1], [0], [0], [0, 0, 1, 0], [], []>} : vector<8x32xf32>, vector<8x32xf32>, vector<8x8xf32> -> vector<8x8xf32>
      %c3 = arith.constant 3 : index
      %c0_87 = arith.constant 0 : index
      %c0_88 = arith.constant 0 : index
      %123 = vector.load %arg7[%c3, %c0_87, %c0_88] : memref<4x8x1xf32, #tpu.memory_space<vmem>>, vector<1x8x1xf32>
      %124 = vector.shape_cast %123 : vector<1x8x1xf32> to vector<8x1xf32>
      %cst_89 = arith.constant dense<0xFF800000> : vector<8xf32>
      %125 = vector.multi_reduction <maximumf>, %122, %cst_89 [1] : vector<8x8xf32> to vector<8xf32>
      %126 = vector.shape_cast %125 : vector<8xf32> to vector<8x1xf32>
      %127 = arith.maximumf %124, %126 : vector<8x1xf32>
      %128 = arith.subf %124, %127 : vector<8x1xf32>
      %129 = math.exp %128 : vector<8x1xf32>
      %130 = vector.broadcast %127 : vector<8x1xf32> to vector<8x8xf32>
      %131 = arith.subf %122, %130 : vector<8x8xf32>
      %132 = math.exp %131 : vector<8x8xf32>
      %c3_90 = arith.constant 3 : index
      %c0_91 = arith.constant 0 : index
      %c0_92 = arith.constant 0 : index
      %133 = vector.load %arg8[%c3_90, %c0_91, %c0_92] : memref<4x8x1xf32, #tpu.memory_space<vmem>>, vector<1x8x1xf32>
      %134 = vector.shape_cast %133 : vector<1x8x1xf32> to vector<8x1xf32>
      %135 = arith.mulf %129, %134 : vector<8x1xf32>
      %cst_93 = arith.constant dense<0.000000e+00> : vector<8xf32>
      %136 = vector.multi_reduction <add>, %132, %cst_93 [1] : vector<8x8xf32> to vector<8xf32>
      %137 = vector.shape_cast %136 : vector<8xf32> to vector<8x1xf32>
      %138 = arith.addf %135, %137 : vector<8x1xf32>
      %c3_94 = arith.constant 3 : index
      %c0_95 = arith.constant 0 : index
      %c0_96 = arith.constant 0 : index
      %139 = vector.load %arg8[%c3_94, %c0_95, %c0_96] : memref<4x8x1xf32, #tpu.memory_space<vmem>>, vector<1x8x1xf32>
      %140 = vector.shape_cast %139 : vector<1x8x1xf32> to vector<8x1xf32>
      %141 = vector.shape_cast %138 : vector<8x1xf32> to vector<1x8x1xf32>
      tpu.vector_store %arg8[%c3_94, %c0_95, %c0_96], %141 {strides = array<i32>} : memref<4x8x1xf32, #tpu.memory_space<vmem>>, vector<1x8x1xf32>,
      %c3_97 = arith.constant 3 : index
      %c0_98 = arith.constant 0 : index
      %c0_99 = arith.constant 0 : index
      %142 = vector.load %arg7[%c3_97, %c0_98, %c0_99] : memref<4x8x1xf32, #tpu.memory_space<vmem>>, vector<1x8x1xf32>
      %143 = vector.shape_cast %142 : vector<1x8x1xf32> to vector<8x1xf32>
      %144 = vector.shape_cast %127 : vector<8x1xf32> to vector<1x8x1xf32>
      tpu.vector_store %arg7[%c3_97, %c0_98, %c0_99], %144 {strides = array<i32>} : memref<4x8x1xf32, #tpu.memory_space<vmem>>, vector<1x8x1xf32>,
      %cst_100 = arith.constant dense<0.000000e+00> : vector<8x32xf32>
      %145 = tpu.matmul %132, %121, %cst_100 {dimension_numbers = #tpu.dot_dimension_numbers<[1], [0], [0], [1], [0, 0, 1, 1], [], []>} : vector<8x8xf32>, vector<8x32xf32>, vector<8x32xf32> -> vector<8x32xf32>
      %146 = vector.shape_cast %129 : vector<8x1xf32> to vector<8x1xf32>
      %147 = vector.broadcast %146 : vector<8x1xf32> to vector<8x32xf32>
      %148 = tpu.concatenate %45, %79, %113, %147 in 1 : vector<8x32xf32>, vector<8x32xf32>, vector<8x32xf32>, vector<8x32xf32> -> vector<8x128xf32>
      %149 = tpu.concatenate %43, %77, %111, %145 in 1 : vector<8x32xf32>, vector<8x32xf32>, vector<8x32xf32>, vector<8x32xf32> -> vector<8x128xf32>
      %c0_101 = arith.constant 0 : index
      %c0_102 = arith.constant 0 : index
      %150 = vector.load %arg9[%c0_101, %c0_102] : memref<8x128xf32, #tpu.memory_space<vmem>>, vector<8x128xf32>
      %151 = arith.mulf %148, %150 : vector<8x128xf32>
      %152 = arith.addf %151, %149 : vector<8x128xf32>
      %c0_103 = arith.constant 0 : index
      %c0_104 = arith.constant 0 : index
      %153 = vector.load %arg9[%c0_103, %c0_104] : memref<8x128xf32, #tpu.memory_space<vmem>>, vector<8x128xf32>
      tpu.vector_store %arg9[%c0_103, %c0_104], %152 {strides = array<i32>} : memref<8x128xf32, #tpu.memory_space<vmem>>, vector<8x128xf32>,
    } else {
    }
    %6 = arith.cmpi eq, %arg2, %arg1 : i32
    %7 = arith.extui %6 : i1 to i32
    %c0_i32_2 = arith.constant 0 : i32
    %8 = arith.cmpi ne, %7, %c0_i32_2 : i32
    scf.if %8 {
      %c8_i32 = arith.constant 8 : i32
      %12 = arith.muli %arg1, %c8_i32 : i32
      %13 = tpu.iota {dimensions = array<i32: 0>} : vector<8x8xi32>
      %14 = vector.broadcast %12 : i32 to vector<8x8xi32>
      %15 = arith.addi %14, %13 : vector<8x8xi32>
      %c8_i32_5 = arith.constant 8 : i32
      %16 = arith.muli %arg2, %c8_i32_5 : i32
      %17 = tpu.iota {dimensions = array<i32: 1>} : vector<8x8xi32>
      %18 = vector.broadcast %16 : i32 to vector<8x8xi32>
      %19 = arith.addi %18, %17 : vector<8x8xi32>
      %20 = arith.cmpi sle, %19, %15 : vector<8x8xi32>
      %c0 = arith.constant 0 : index
      %c0_6 = arith.constant 0 : index
      %c0_7 = arith.constant 0 : index
      %21 = vector.load %arg3[%c0, %c0_6, %c0_7] : memref<1x8x128xf32, #tpu.memory_space<vmem>>, vector<1x8x32xf32>
      %22 = vector.shape_cast %21 : vector<1x8x32xf32> to vector<8x32xf32>
      %cst = arith.constant 0.176776692 : f32
      %23 = vector.broadcast %cst : f32 to vector<8x32xf32>
      %24 = arith.mulf %22, %23 : vector<8x32xf32>
      %c0_8 = arith.constant 0 : index
      %c0_9 = arith.constant 0 : index
      %c0_10 = arith.constant 0 : index
      %25 = vector.load %arg4[%c0_8, %c0_9, %c0_10] : memref<1x8x128xf32, #tpu.memory_space<vmem>>, vector<1x8x32xf32>
      %26 = vector.shape_cast %25 : vector<1x8x32xf32> to vector<8x32xf32>
      %c0_11 = arith.constant 0 : index
      %c0_12 = arith.constant 0 : index
      %c0_13 = arith.constant 0 : index
      %27 = vector.load %arg5[%c0_11, %c0_12, %c0_13] : memref<1x8x128xf32, #tpu.memory_space<vmem>>, vector<1x8x32xf32>
      %28 = vector.shape_cast %27 : vector<1x8x32xf32> to vector<8x32xf32>
      %cst_14 = arith.constant dense<0.000000e+00> : vector<8x8xf32>
      %29 = tpu.matmul %24, %26, %cst_14 {dimension_numbers = #tpu.dot_dimension_numbers<[1], [1], [0], [0], [0, 0, 1, 0], [], []>} : vector<8x32xf32>, vector<8x32xf32>, vector<8x8xf32> -> vector<8x8xf32>
      %cst_15 = arith.constant -1.000000e+30 : f32
      %30 = vector.broadcast %cst_15 : f32 to vector<8x8xf32>
      %31 = arith.select %20, %29, %30 : vector<8x8xi1>, vector<8x8xf32>
      %c0_16 = arith.constant 0 : index
      %c0_17 = arith.constant 0 : index
      %c0_18 = arith.constant 0 : index
      %32 = vector.load %arg7[%c0_16, %c0_17, %c0_18] : memref<4x8x1xf32, #tpu.memory_space<vmem>>, vector<1x8x1xf32>
      %33 = vector.shape_cast %32 : vector<1x8x1xf32> to vector<8x1xf32>
      %cst_19 = arith.constant dense<0xFF800000> : vector<8xf32>
      %34 = vector.multi_reduction <maximumf>, %31, %cst_19 [1] : vector<8x8xf32> to vector<8xf32>
      %35 = vector.shape_cast %34 : vector<8xf32> to vector<8x1xf32>
      %36 = arith.maximumf %33, %35 : vector<8x1xf32>
      %37 = arith.subf %33, %36 : vector<8x1xf32>
      %38 = math.exp %37 : vector<8x1xf32>
      %39 = vector.broadcast %36 : vector<8x1xf32> to vector<8x8xf32>
      %40 = arith.subf %31, %39 : vector<8x8xf32>
      %41 = math.exp %40 : vector<8x8xf32>
      %c0_20 = arith.constant 0 : index
      %c0_21 = arith.constant 0 : index
      %c0_22 = arith.constant 0 : index
      %42 = vector.load %arg8[%c0_20, %c0_21, %c0_22] : memref<4x8x1xf32, #tpu.memory_space<vmem>>, vector<1x8x1xf32>
      %43 = vector.shape_cast %42 : vector<1x8x1xf32> to vector<8x1xf32>
      %44 = arith.mulf %38, %43 : vector<8x1xf32>
      %cst_23 = arith.constant dense<0.000000e+00> : vector<8xf32>
      %45 = vector.multi_reduction <add>, %41, %cst_23 [1] : vector<8x8xf32> to vector<8xf32>
      %46 = vector.shape_cast %45 : vector<8xf32> to vector<8x1xf32>
      %47 = arith.addf %44, %46 : vector<8x1xf32>
      %c0_24 = arith.constant 0 : index
      %c0_25 = arith.constant 0 : index
      %c0_26 = arith.constant 0 : index
      %48 = vector.load %arg8[%c0_24, %c0_25, %c0_26] : memref<4x8x1xf32, #tpu.memory_space<vmem>>, vector<1x8x1xf32>
      %49 = vector.shape_cast %48 : vector<1x8x1xf32> to vector<8x1xf32>
      %50 = vector.shape_cast %47 : vector<8x1xf32> to vector<1x8x1xf32>
      tpu.vector_store %arg8[%c0_24, %c0_25, %c0_26], %50 {strides = array<i32>} : memref<4x8x1xf32, #tpu.memory_space<vmem>>, vector<1x8x1xf32>,
      %c0_27 = arith.constant 0 : index
      %c0_28 = arith.constant 0 : index
      %c0_29 = arith.constant 0 : index
      %51 = vector.load %arg7[%c0_27, %c0_28, %c0_29] : memref<4x8x1xf32, #tpu.memory_space<vmem>>, vector<1x8x1xf32>
      %52 = vector.shape_cast %51 : vector<1x8x1xf32> to vector<8x1xf32>
      %53 = vector.shape_cast %36 : vector<8x1xf32> to vector<1x8x1xf32>
      tpu.vector_store %arg7[%c0_27, %c0_28, %c0_29], %53 {strides = array<i32>} : memref<4x8x1xf32, #tpu.memory_space<vmem>>, vector<1x8x1xf32>,
      %cst_30 = arith.constant dense<0.000000e+00> : vector<8x32xf32>
      %54 = tpu.matmul %41, %28, %cst_30 {dimension_numbers = #tpu.dot_dimension_numbers<[1], [0], [0], [1], [0, 0, 1, 1], [], []>} : vector<8x8xf32>, vector<8x32xf32>, vector<8x32xf32> -> vector<8x32xf32>
      %55 = vector.shape_cast %38 : vector<8x1xf32> to vector<8x1xf32>
      %56 = vector.broadcast %55 : vector<8x1xf32> to vector<8x32xf32>
      %c0_31 = arith.constant 0 : index
      %c0_32 = arith.constant 0 : index
      %c32 = arith.constant 32 : index
      %57 = vector.load %arg3[%c0_31, %c0_32, %c32] : memref<1x8x128xf32, #tpu.memory_space<vmem>>, vector<1x8x32xf32>
      %58 = vector.shape_cast %57 : vector<1x8x32xf32> to vector<8x32xf32>
      %cst_33 = arith.constant 0.176776692 : f32
      %59 = vector.broadcast %cst_33 : f32 to vector<8x32xf32>
      %60 = arith.mulf %58, %59 : vector<8x32xf32>
      %c0_34 = arith.constant 0 : index
      %c0_35 = arith.constant 0 : index
      %c32_36 = arith.constant 32 : index
      %61 = vector.load %arg4[%c0_34, %c0_35, %c32_36] : memref<1x8x128xf32, #tpu.memory_space<vmem>>, vector<1x8x32xf32>
      %62 = vector.shape_cast %61 : vector<1x8x32xf32> to vector<8x32xf32>
      %c0_37 = arith.constant 0 : index
      %c0_38 = arith.constant 0 : index
      %c32_39 = arith.constant 32 : index
      %63 = vector.load %arg5[%c0_37, %c0_38, %c32_39] : memref<1x8x128xf32, #tpu.memory_space<vmem>>, vector<1x8x32xf32>
      %64 = vector.shape_cast %63 : vector<1x8x32xf32> to vector<8x32xf32>
      %cst_40 = arith.constant dense<0.000000e+00> : vector<8x8xf32>
      %65 = tpu.matmul %60, %62, %cst_40 {dimension_numbers = #tpu.dot_dimension_numbers<[1], [1], [0], [0], [0, 0, 1, 0], [], []>} : vector<8x32xf32>, vector<8x32xf32>, vector<8x8xf32> -> vector<8x8xf32>
      %cst_41 = arith.constant -1.000000e+30 : f32
      %66 = vector.broadcast %cst_41 : f32 to vector<8x8xf32>
      %67 = arith.select %20, %65, %66 : vector<8x8xi1>, vector<8x8xf32>
      %c1 = arith.constant 1 : index
      %c0_42 = arith.constant 0 : index
      %c0_43 = arith.constant 0 : index
      %68 = vector.load %arg7[%c1, %c0_42, %c0_43] : memref<4x8x1xf32, #tpu.memory_space<vmem>>, vector<1x8x1xf32>
      %69 = vector.shape_cast %68 : vector<1x8x1xf32> to vector<8x1xf32>
      %cst_44 = arith.constant dense<0xFF800000> : vector<8xf32>
      %70 = vector.multi_reduction <maximumf>, %67, %cst_44 [1] : vector<8x8xf32> to vector<8xf32>
      %71 = vector.shape_cast %70 : vector<8xf32> to vector<8x1xf32>
      %72 = arith.maximumf %69, %71 : vector<8x1xf32>
      %73 = arith.subf %69, %72 : vector<8x1xf32>
      %74 = math.exp %73 : vector<8x1xf32>
      %75 = vector.broadcast %72 : vector<8x1xf32> to vector<8x8xf32>
      %76 = arith.subf %67, %75 : vector<8x8xf32>
      %77 = math.exp %76 : vector<8x8xf32>
      %c1_45 = arith.constant 1 : index
      %c0_46 = arith.constant 0 : index
      %c0_47 = arith.constant 0 : index
      %78 = vector.load %arg8[%c1_45, %c0_46, %c0_47] : memref<4x8x1xf32, #tpu.memory_space<vmem>>, vector<1x8x1xf32>
      %79 = vector.shape_cast %78 : vector<1x8x1xf32> to vector<8x1xf32>
      %80 = arith.mulf %74, %79 : vector<8x1xf32>
      %cst_48 = arith.constant dense<0.000000e+00> : vector<8xf32>
      %81 = vector.multi_reduction <add>, %77, %cst_48 [1] : vector<8x8xf32> to vector<8xf32>
      %82 = vector.shape_cast %81 : vector<8xf32> to vector<8x1xf32>
      %83 = arith.addf %80, %82 : vector<8x1xf32>
      %c1_49 = arith.constant 1 : index
      %c0_50 = arith.constant 0 : index
      %c0_51 = arith.constant 0 : index
      %84 = vector.load %arg8[%c1_49, %c0_50, %c0_51] : memref<4x8x1xf32, #tpu.memory_space<vmem>>, vector<1x8x1xf32>
      %85 = vector.shape_cast %84 : vector<1x8x1xf32> to vector<8x1xf32>
      %86 = vector.shape_cast %83 : vector<8x1xf32> to vector<1x8x1xf32>
      tpu.vector_store %arg8[%c1_49, %c0_50, %c0_51], %86 {strides = array<i32>} : memref<4x8x1xf32, #tpu.memory_space<vmem>>, vector<1x8x1xf32>,
      %c1_52 = arith.constant 1 : index
      %c0_53 = arith.constant 0 : index
      %c0_54 = arith.constant 0 : index
      %87 = vector.load %arg7[%c1_52, %c0_53, %c0_54] : memref<4x8x1xf32, #tpu.memory_space<vmem>>, vector<1x8x1xf32>
      %88 = vector.shape_cast %87 : vector<1x8x1xf32> to vector<8x1xf32>
      %89 = vector.shape_cast %72 : vector<8x1xf32> to vector<1x8x1xf32>
      tpu.vector_store %arg7[%c1_52, %c0_53, %c0_54], %89 {strides = array<i32>} : memref<4x8x1xf32, #tpu.memory_space<vmem>>, vector<1x8x1xf32>,
      %cst_55 = arith.constant dense<0.000000e+00> : vector<8x32xf32>
      %90 = tpu.matmul %77, %64, %cst_55 {dimension_numbers = #tpu.dot_dimension_numbers<[1], [0], [0], [1], [0, 0, 1, 1], [], []>} : vector<8x8xf32>, vector<8x32xf32>, vector<8x32xf32> -> vector<8x32xf32>
      %91 = vector.shape_cast %74 : vector<8x1xf32> to vector<8x1xf32>
      %92 = vector.broadcast %91 : vector<8x1xf32> to vector<8x32xf32>
      %c0_56 = arith.constant 0 : index
      %c0_57 = arith.constant 0 : index
      %c64 = arith.constant 64 : index
      %93 = vector.load %arg3[%c0_56, %c0_57, %c64] : memref<1x8x128xf32, #tpu.memory_space<vmem>>, vector<1x8x32xf32>
      %94 = vector.shape_cast %93 : vector<1x8x32xf32> to vector<8x32xf32>
      %cst_58 = arith.constant 0.176776692 : f32
      %95 = vector.broadcast %cst_58 : f32 to vector<8x32xf32>
      %96 = arith.mulf %94, %95 : vector<8x32xf32>
      %c0_59 = arith.constant 0 : index
      %c0_60 = arith.constant 0 : index
      %c64_61 = arith.constant 64 : index
      %97 = vector.load %arg4[%c0_59, %c0_60, %c64_61] : memref<1x8x128xf32, #tpu.memory_space<vmem>>, vector<1x8x32xf32>
      %98 = vector.shape_cast %97 : vector<1x8x32xf32> to vector<8x32xf32>
      %c0_62 = arith.constant 0 : index
      %c0_63 = arith.constant 0 : index
      %c64_64 = arith.constant 64 : index
      %99 = vector.load %arg5[%c0_62, %c0_63, %c64_64] : memref<1x8x128xf32, #tpu.memory_space<vmem>>, vector<1x8x32xf32>
      %100 = vector.shape_cast %99 : vector<1x8x32xf32> to vector<8x32xf32>
      %cst_65 = arith.constant dense<0.000000e+00> : vector<8x8xf32>
      %101 = tpu.matmul %96, %98, %cst_65 {dimension_numbers = #tpu.dot_dimension_numbers<[1], [1], [0], [0], [0, 0, 1, 0], [], []>} : vector<8x32xf32>, vector<8x32xf32>, vector<8x8xf32> -> vector<8x8xf32>
      %cst_66 = arith.constant -1.000000e+30 : f32
      %102 = vector.broadcast %cst_66 : f32 to vector<8x8xf32>
      %103 = arith.select %20, %101, %102 : vector<8x8xi1>, vector<8x8xf32>
      %c2 = arith.constant 2 : index
      %c0_67 = arith.constant 0 : index
      %c0_68 = arith.constant 0 : index
      %104 = vector.load %arg7[%c2, %c0_67, %c0_68] : memref<4x8x1xf32, #tpu.memory_space<vmem>>, vector<1x8x1xf32>
      %105 = vector.shape_cast %104 : vector<1x8x1xf32> to vector<8x1xf32>
      %cst_69 = arith.constant dense<0xFF800000> : vector<8xf32>
      %106 = vector.multi_reduction <maximumf>, %103, %cst_69 [1] : vector<8x8xf32> to vector<8xf32>
      %107 = vector.shape_cast %106 : vector<8xf32> to vector<8x1xf32>
      %108 = arith.maximumf %105, %107 : vector<8x1xf32>
      %109 = arith.subf %105, %108 : vector<8x1xf32>
      %110 = math.exp %109 : vector<8x1xf32>
      %111 = vector.broadcast %108 : vector<8x1xf32> to vector<8x8xf32>
      %112 = arith.subf %103, %111 : vector<8x8xf32>
      %113 = math.exp %112 : vector<8x8xf32>
      %c2_70 = arith.constant 2 : index
      %c0_71 = arith.constant 0 : index
      %c0_72 = arith.constant 0 : index
      %114 = vector.load %arg8[%c2_70, %c0_71, %c0_72] : memref<4x8x1xf32, #tpu.memory_space<vmem>>, vector<1x8x1xf32>
      %115 = vector.shape_cast %114 : vector<1x8x1xf32> to vector<8x1xf32>
      %116 = arith.mulf %110, %115 : vector<8x1xf32>
      %cst_73 = arith.constant dense<0.000000e+00> : vector<8xf32>
      %117 = vector.multi_reduction <add>, %113, %cst_73 [1] : vector<8x8xf32> to vector<8xf32>
      %118 = vector.shape_cast %117 : vector<8xf32> to vector<8x1xf32>
      %119 = arith.addf %116, %118 : vector<8x1xf32>
      %c2_74 = arith.constant 2 : index
      %c0_75 = arith.constant 0 : index
      %c0_76 = arith.constant 0 : index
      %120 = vector.load %arg8[%c2_74, %c0_75, %c0_76] : memref<4x8x1xf32, #tpu.memory_space<vmem>>, vector<1x8x1xf32>
      %121 = vector.shape_cast %120 : vector<1x8x1xf32> to vector<8x1xf32>
      %122 = vector.shape_cast %119 : vector<8x1xf32> to vector<1x8x1xf32>
      tpu.vector_store %arg8[%c2_74, %c0_75, %c0_76], %122 {strides = array<i32>} : memref<4x8x1xf32, #tpu.memory_space<vmem>>, vector<1x8x1xf32>,
      %c2_77 = arith.constant 2 : index
      %c0_78 = arith.constant 0 : index
      %c0_79 = arith.constant 0 : index
      %123 = vector.load %arg7[%c2_77, %c0_78, %c0_79] : memref<4x8x1xf32, #tpu.memory_space<vmem>>, vector<1x8x1xf32>
      %124 = vector.shape_cast %123 : vector<1x8x1xf32> to vector<8x1xf32>
      %125 = vector.shape_cast %108 : vector<8x1xf32> to vector<1x8x1xf32>
      tpu.vector_store %arg7[%c2_77, %c0_78, %c0_79], %125 {strides = array<i32>} : memref<4x8x1xf32, #tpu.memory_space<vmem>>, vector<1x8x1xf32>,
      %cst_80 = arith.constant dense<0.000000e+00> : vector<8x32xf32>
      %126 = tpu.matmul %113, %100, %cst_80 {dimension_numbers = #tpu.dot_dimension_numbers<[1], [0], [0], [1], [0, 0, 1, 1], [], []>} : vector<8x8xf32>, vector<8x32xf32>, vector<8x32xf32> -> vector<8x32xf32>
      %127 = vector.shape_cast %110 : vector<8x1xf32> to vector<8x1xf32>
      %128 = vector.broadcast %127 : vector<8x1xf32> to vector<8x32xf32>
      %c0_81 = arith.constant 0 : index
      %c0_82 = arith.constant 0 : index
      %c96 = arith.constant 96 : index
      %129 = vector.load %arg3[%c0_81, %c0_82, %c96] : memref<1x8x128xf32, #tpu.memory_space<vmem>>, vector<1x8x32xf32>
      %130 = vector.shape_cast %129 : vector<1x8x32xf32> to vector<8x32xf32>
      %cst_83 = arith.constant 0.176776692 : f32
      %131 = vector.broadcast %cst_83 : f32 to vector<8x32xf32>
      %132 = arith.mulf %130, %131 : vector<8x32xf32>
      %c0_84 = arith.constant 0 : index
      %c0_85 = arith.constant 0 : index
      %c96_86 = arith.constant 96 : index
      %133 = vector.load %arg4[%c0_84, %c0_85, %c96_86] : memref<1x8x128xf32, #tpu.memory_space<vmem>>, vector<1x8x32xf32>
      %134 = vector.shape_cast %133 : vector<1x8x32xf32> to vector<8x32xf32>
      %c0_87 = arith.constant 0 : index
      %c0_88 = arith.constant 0 : index
      %c96_89 = arith.constant 96 : index
      %135 = vector.load %arg5[%c0_87, %c0_88, %c96_89] : memref<1x8x128xf32, #tpu.memory_space<vmem>>, vector<1x8x32xf32>
      %136 = vector.shape_cast %135 : vector<1x8x32xf32> to vector<8x32xf32>
      %cst_90 = arith.constant dense<0.000000e+00> : vector<8x8xf32>
      %137 = tpu.matmul %132, %134, %cst_90 {dimension_numbers = #tpu.dot_dimension_numbers<[1], [1], [0], [0], [0, 0, 1, 0], [], []>} : vector<8x32xf32>, vector<8x32xf32>, vector<8x8xf32> -> vector<8x8xf32>
      %cst_91 = arith.constant -1.000000e+30 : f32
      %138 = vector.broadcast %cst_91 : f32 to vector<8x8xf32>
      %139 = arith.select %20, %137, %138 : vector<8x8xi1>, vector<8x8xf32>
      %c3 = arith.constant 3 : index
      %c0_92 = arith.constant 0 : index
      %c0_93 = arith.constant 0 : index
      %140 = vector.load %arg7[%c3, %c0_92, %c0_93] : memref<4x8x1xf32, #tpu.memory_space<vmem>>, vector<1x8x1xf32>
      %141 = vector.shape_cast %140 : vector<1x8x1xf32> to vector<8x1xf32>
      %cst_94 = arith.constant dense<0xFF800000> : vector<8xf32>
      %142 = vector.multi_reduction <maximumf>, %139, %cst_94 [1] : vector<8x8xf32> to vector<8xf32>
      %143 = vector.shape_cast %142 : vector<8xf32> to vector<8x1xf32>
      %144 = arith.maximumf %141, %143 : vector<8x1xf32>
      %145 = arith.subf %141, %144 : vector<8x1xf32>
      %146 = math.exp %145 : vector<8x1xf32>
      %147 = vector.broadcast %144 : vector<8x1xf32> to vector<8x8xf32>
      %148 = arith.subf %139, %147 : vector<8x8xf32>
      %149 = math.exp %148 : vector<8x8xf32>
      %c3_95 = arith.constant 3 : index
      %c0_96 = arith.constant 0 : index
      %c0_97 = arith.constant 0 : index
      %150 = vector.load %arg8[%c3_95, %c0_96, %c0_97] : memref<4x8x1xf32, #tpu.memory_space<vmem>>, vector<1x8x1xf32>
      %151 = vector.shape_cast %150 : vector<1x8x1xf32> to vector<8x1xf32>
      %152 = arith.mulf %146, %151 : vector<8x1xf32>
      %cst_98 = arith.constant dense<0.000000e+00> : vector<8xf32>
      %153 = vector.multi_reduction <add>, %149, %cst_98 [1] : vector<8x8xf32> to vector<8xf32>
      %154 = vector.shape_cast %153 : vector<8xf32> to vector<8x1xf32>
      %155 = arith.addf %152, %154 : vector<8x1xf32>
      %c3_99 = arith.constant 3 : index
      %c0_100 = arith.constant 0 : index
      %c0_101 = arith.constant 0 : index
      %156 = vector.load %arg8[%c3_99, %c0_100, %c0_101] : memref<4x8x1xf32, #tpu.memory_space<vmem>>, vector<1x8x1xf32>
      %157 = vector.shape_cast %156 : vector<1x8x1xf32> to vector<8x1xf32>
      %158 = vector.shape_cast %155 : vector<8x1xf32> to vector<1x8x1xf32>
      tpu.vector_store %arg8[%c3_99, %c0_100, %c0_101], %158 {strides = array<i32>} : memref<4x8x1xf32, #tpu.memory_space<vmem>>, vector<1x8x1xf32>,
      %c3_102 = arith.constant 3 : index
      %c0_103 = arith.constant 0 : index
      %c0_104 = arith.constant 0 : index
      %159 = vector.load %arg7[%c3_102, %c0_103, %c0_104] : memref<4x8x1xf32, #tpu.memory_space<vmem>>, vector<1x8x1xf32>
      %160 = vector.shape_cast %159 : vector<1x8x1xf32> to vector<8x1xf32>
      %161 = vector.shape_cast %144 : vector<8x1xf32> to vector<1x8x1xf32>
      tpu.vector_store %arg7[%c3_102, %c0_103, %c0_104], %161 {strides = array<i32>} : memref<4x8x1xf32, #tpu.memory_space<vmem>>, vector<1x8x1xf32>,
      %cst_105 = arith.constant dense<0.000000e+00> : vector<8x32xf32>
      %162 = tpu.matmul %149, %136, %cst_105 {dimension_numbers = #tpu.dot_dimension_numbers<[1], [0], [0], [1], [0, 0, 1, 1], [], []>} : vector<8x8xf32>, vector<8x32xf32>, vector<8x32xf32> -> vector<8x32xf32>
      %163 = vector.shape_cast %146 : vector<8x1xf32> to vector<8x1xf32>
      %164 = vector.broadcast %163 : vector<8x1xf32> to vector<8x32xf32>
      %165 = tpu.concatenate %56, %92, %128, %164 in 1 : vector<8x32xf32>, vector<8x32xf32>, vector<8x32xf32>, vector<8x32xf32> -> vector<8x128xf32>
      %166 = tpu.concatenate %54, %90, %126, %162 in 1 : vector<8x32xf32>, vector<8x32xf32>, vector<8x32xf32>, vector<8x32xf32> -> vector<8x128xf32>
      %c0_106 = arith.constant 0 : index
      %c0_107 = arith.constant 0 : index
      %167 = vector.load %arg9[%c0_106, %c0_107] : memref<8x128xf32, #tpu.memory_space<vmem>>, vector<8x128xf32>
      %168 = arith.mulf %165, %167 : vector<8x128xf32>
      %169 = arith.addf %168, %166 : vector<8x128xf32>
      %c0_108 = arith.constant 0 : index
      %c0_109 = arith.constant 0 : index
      %170 = vector.load %arg9[%c0_108, %c0_109] : memref<8x128xf32, #tpu.memory_space<vmem>>, vector<8x128xf32>
      tpu.vector_store %arg9[%c0_108, %c0_109], %169 {strides = array<i32>} : memref<8x128xf32, #tpu.memory_space<vmem>>, vector<8x128xf32>,
    } else {
    }
    %c0_i32_3 = arith.constant 0 : i32
    %9 = arith.cmpi eq, %arg2, %c0_i32_3 : i32
    %10 = arith.extui %9 : i1 to i32
    %c0_i32_4 = arith.constant 0 : i32
    %11 = arith.cmpi ne, %10, %c0_i32_4 : i32
    scf.if %11 {
      %c0 = arith.constant 0 : index
      %c0_5 = arith.constant 0 : index
      %c0_6 = arith.constant 0 : index
      %12 = vector.load %arg8[%c0, %c0_5, %c0_6] : memref<4x8x1xf32, #tpu.memory_space<vmem>>, vector<1x8x1xf32>
      %13 = vector.shape_cast %12 : vector<1x8x1xf32> to vector<8x1xf32>
      %cst = arith.constant 1.000000e+00 : f32
      %14 = vector.broadcast %cst : f32 to vector<8x1xf32>
      %15 = arith.divf %14, %13 : vector<8x1xf32>
      %16 = vector.shape_cast %15 : vector<8x1xf32> to vector<8x1xf32>
      %17 = vector.broadcast %16 : vector<8x1xf32> to vector<8x32xf32>
      %c1 = arith.constant 1 : index
      %c0_7 = arith.constant 0 : index
      %c0_8 = arith.constant 0 : index
      %18 = vector.load %arg8[%c1, %c0_7, %c0_8] : memref<4x8x1xf32, #tpu.memory_space<vmem>>, vector<1x8x1xf32>
      %19 = vector.shape_cast %18 : vector<1x8x1xf32> to vector<8x1xf32>
      %cst_9 = arith.constant 1.000000e+00 : f32
      %20 = vector.broadcast %cst_9 : f32 to vector<8x1xf32>
      %21 = arith.divf %20, %19 : vector<8x1xf32>
      %22 = vector.shape_cast %21 : vector<8x1xf32> to vector<8x1xf32>
      %23 = vector.broadcast %22 : vector<8x1xf32> to vector<8x32xf32>
      %c2 = arith.constant 2 : index
      %c0_10 = arith.constant 0 : index
      %c0_11 = arith.constant 0 : index
      %24 = vector.load %arg8[%c2, %c0_10, %c0_11] : memref<4x8x1xf32, #tpu.memory_space<vmem>>, vector<1x8x1xf32>
      %25 = vector.shape_cast %24 : vector<1x8x1xf32> to vector<8x1xf32>
      %cst_12 = arith.constant 1.000000e+00 : f32
      %26 = vector.broadcast %cst_12 : f32 to vector<8x1xf32>
      %27 = arith.divf %26, %25 : vector<8x1xf32>
      %28 = vector.shape_cast %27 : vector<8x1xf32> to vector<8x1xf32>
      %29 = vector.broadcast %28 : vector<8x1xf32> to vector<8x32xf32>
      %c3 = arith.constant 3 : index
      %c0_13 = arith.constant 0 : index
      %c0_14 = arith.constant 0 : index
      %30 = vector.load %arg8[%c3, %c0_13, %c0_14] : memref<4x8x1xf32, #tpu.memory_space<vmem>>, vector<1x8x1xf32>
      %31 = vector.shape_cast %30 : vector<1x8x1xf32> to vector<8x1xf32>
      %cst_15 = arith.constant 1.000000e+00 : f32
      %32 = vector.broadcast %cst_15 : f32 to vector<8x1xf32>
      %33 = arith.divf %32, %31 : vector<8x1xf32>
      %34 = vector.shape_cast %33 : vector<8x1xf32> to vector<8x1xf32>
      %35 = vector.broadcast %34 : vector<8x1xf32> to vector<8x32xf32>
      %36 = tpu.concatenate %17, %23, %29, %35 in 1 : vector<8x32xf32>, vector<8x32xf32>, vector<8x32xf32>, vector<8x32xf32> -> vector<8x128xf32>
      %c0_16 = arith.constant 0 : index
      %c0_17 = arith.constant 0 : index
      %37 = vector.load %arg9[%c0_16, %c0_17] : memref<8x128xf32, #tpu.memory_space<vmem>>, vector<8x128xf32>
      %38 = arith.mulf %37, %36 : vector<8x128xf32>
      %c0_18 = arith.constant 0 : index
      %c0_19 = arith.constant 0 : index
      %c0_20 = arith.constant 0 : index
      %39 = vector.load %arg6[%c0_18, %c0_19, %c0_20] : memref<1x8x128xf32, #tpu.memory_space<vmem>>, vector<1x8x128xf32>
      %40 = vector.shape_cast %39 : vector<1x8x128xf32> to vector<8x128xf32>
      %41 = vector.shape_cast %38 : vector<8x128xf32> to vector<1x8x128xf32>
      tpu.vector_store %arg6[%c0_18, %c0_19, %c0_20], %41 {strides = array<i32>} : memref<1x8x128xf32, #tpu.memory_space<vmem>>, vector<1x8x128xf32>,
    } else {
    }
    return
  }
  func.func @transform_0(%arg0: i32, %arg1: i32, %arg2: i32) -> (i32, i32, i32) {
    %c0_i32 = arith.constant 0 : i32
    %c0_i32_0 = arith.constant 0 : i32
    return %arg0, %arg1, %c0_i32 : i32, i32, i32
  }
  func.func @transform_1(%arg0: i32, %arg1: i32, %arg2: i32) -> (i32, i32, i32) {
    %0 = arith.minsi %arg2, %arg1 : i32
    %c0_i32 = arith.constant 0 : i32
    %c0_i32_0 = arith.constant 0 : i32
    return %arg0, %0, %c0_i32 : i32, i32, i32
  }
  func.func @transform_2(%arg0: i32, %arg1: i32, %arg2: i32) -> (i32, i32, i32) {
    %0 = arith.minsi %arg2, %arg1 : i32
    %c0_i32 = arith.constant 0 : i32
    %c0_i32_0 = arith.constant 0 : i32
    return %arg0, %0, %c0_i32 : i32, i32, i32
  }
  func.func @transform_3(%arg0: i32, %arg1: i32, %arg2: i32) -> (i32, i32, i32) {
    %c0_i32 = arith.constant 0 : i32
    %c0_i32_0 = arith.constant 0 : i32
    return %arg0, %arg1, %c0_i32 : i32, i32, i32
  }
}

</mosaic_0001>

<llo_original>
// kernel: tpu_custom_call.1
$region0: #{tpu_custom_call.1}
  #allocation0 [shape = 'u32[]', space=smem, size = 0x4, offset = 0x4, fixed_abs, tag = 'smem constant byte address 0x4 - core index']
  #allocation1 [shape = 'u32[144,128]{1,0:T(1,128)}', space=vmem, size = 0x12000, scoped, tag = 'internal scratch']
  #allocation2 [shape = 'f32[4,8,1]{2,1,0:T(8,128)}', space=vmem, size = 0x4000, scoped, tag = 'scratch operand']
  #allocation3 [shape = 'f32[4,8,1]{2,1,0:T(8,128)}', space=vmem, size = 0x4000, scoped, tag = 'scratch operand']
  #allocation4 [shape = 'f32[8,128]{1,0:T(8,128)}', space=vmem, size = 0x1000, scoped, tag = 'scratch operand']
  %s0 = inlined_call_operand.hbm [shape: f32[2,8,128], index: 0, kind: input, shape index: {}]
  %s1 = inlined_call_operand.hbm [shape: f32[2,8,128], index: 1, kind: input, shape index: {}]
  %s2 = inlined_call_operand.hbm [shape: f32[2,8,128], index: 2, kind: input, shape index: {}]
  %s3 = inlined_call_operand.hbm [shape: f32[2,8,128], index: 3, kind: output, shape index: {}]
  %s4 = sld [smem:[#allocation0]]
  $region73: #{tpu_custom_call.1} parent=0
    _
  %s6 = ssub.s32 1, %s4
  %s7 = scalar_select 0, %s6, %s4
  $region1: #{tpu_custom_call.1} parent=0
    #allocation5 [shape = 'u8[8192]{0}', space=vmem, size = 0x2000, scoped, tag = 'input window, operand 0']
    #allocation6 [shape = 's32[2]{0}', space=sflag, size = 0x8, scoped, tag = 'scoped memory for tpu_custom_call.1']
    #allocation7 [shape = 's32[2]{0}', space=sflag, size = 0x8, scoped, tag = 'scoped memory for tpu_custom_call.1']
    #allocation8 [shape = 'u8[8192]{0}', space=vmem, size = 0x2000, scoped, tag = 'input window, operand 1']
    #allocation9 [shape = 's32[2]{0}', space=sflag, size = 0x8, scoped, tag = 'scoped memory for tpu_custom_call.1']
    #allocation10 [shape = 'u8[8192]{0}', space=vmem, size = 0x2000, scoped, tag = 'input window, operand 2']
    #allocation11 [shape = 'u8[8192]{0}', space=vmem, size = 0x2000, scoped, tag = 'output window, operand 0']
    %8 = vsyncpa [#allocation6], 0
    %s9 = scalar_lea.sflag [#allocation6], 1
    %10 = vsyncpa %s9, 0
    %11 = vsyncpa [#allocation9], 0
    %s12 = scalar_lea.sflag [#allocation9], 1
    %13 = vsyncpa %s12, 0
    %14 = vsyncpa [#allocation7], 0
    %s15 = scalar_lea.sflag [#allocation7], 1
    %16 = vsyncpa %s15, 0
    loop: start=0, step=1, limit=4
    $region2: #{tpu_custom_call.1} parent=1 // loop_pre_header
      _
    $region3: #{tpu_custom_call.1} parent=1 // loop_header
      %s18 = sphi 0, %s22
      %p19 = scmp.ge.s32.totalorder %s18, 4
      %s25 = sphi 0, %s44
      %s26 = sphi 0, %s40
      %s27 = sphi 0, %s36
      %s28 = sphi 0, %s25
      %s29 = sphi 0, %s26
      %s30 = sphi 0, %s27
      %s31 = sphi 0, %s28
      %s32 = sphi 0, %s29
      %s33 = sphi 0, %s30
      %s49 = sphi 0, %s51
      %s52 = sphi 0, %s49
      %s53 = sphi 0, %s52
      %s69 = sphi 0, %s53
      %s81 = sphi 0, %s83
      %s84 = sphi 0, %s81
      %s85 = sphi 0, %s84
      %s101 = sphi 0, %s85
      %s113 = sphi 0, %s115
      %s116 = sphi 0, %s113
      %s117 = sphi 0, %s116
      %s133 = sphi 0, %s117
      %s141 = sphi 0, %s143
      %s144 = sphi 0, %s141
      %s145 = sphi 0, %s144
      %s161 = sphi 0, %s145
    $region4: #{tpu_custom_call.1} parent=1 // loop_header_branch
      %21 = sbr.rel (%p19) target = $region8
    $region5: #{tpu_custom_call.1} parent=1 // loop_body
      %s23 = ssub.s32 %s18, 1
      %s24 = ssub.s32 %s18, 2
      %s34 = sadd.s32 1, %s27
      %p35 = scmp.ge.s32.totalorder %s34, 1
      %s36 = scalar_select %p35, 0, %s34
      %s37 = sadd.s32 1, %s26
      %s38 = scalar_select %p35, %s37, %s26
      %p39 = scmp.ge.s32.totalorder %s38, 1
      %s40 = scalar_select %p39, 0, %s38
      %s41 = sadd.s32 1, %s25
      %s42 = scalar_select %p39, %s41, %s25
      %p43 = scmp.ge.s32.totalorder %s42, 2
      %s44 = scalar_select %p43, 0, %s42
      %s45 = ssub.s32 %s25, %s44
      %s46 = ssub.s32 %s26, %s40
      %s47 = sor.u32 %s45, %s46
      %p48 = scmp.eq.s32.totalorder %s47, 0
      %s50 = sadd.s32 %s49, 1
      %s51 = scalar_select %p48, %s49, %s50
      %p54 = pneg %p48
      %p55 = scmp.eq.s32.totalorder %s18, 1
      %p56 = por %p54, %p55
      %p57 = scmp.ne.s32.totalorder %s49, %s52
      %p58 = scmp.eq.s32.totalorder %s18, 0
      %p59 = por %p57, %p58
      %p60 = scmp.ne.s32.totalorder %s49, %s52
      %p61 = scmp.eq.s32.totalorder %s23, 1
      %p62 = por %p60, %p61
      %p63 = scmp.ne.s32.totalorder %s52, %s53
      %p64 = scmp.eq.s32.totalorder %s23, 0
      %p65 = por %p63, %p64
      %p66 = scmp.ne.s32.totalorder %s52, %s53
      %p67 = scmp.eq.s32.totalorder %s24, 1
      %p68 = por %p66, %p67
      %p70 = scmp.ne.s32.totalorder %s53, %s69
      %p71 = scmp.eq.s32.totalorder %s24, 0
      %p72 = por %p70, %p71
      %p73 = scmp.lt.s32.totalorder %s27, %s26
      %s74 = scalar_select %p73, %s27, %s26
      %p75 = scmp.lt.s32.totalorder %s36, %s40
      %s76 = scalar_select %p75, %s36, %s40
      %s77 = ssub.s32 %s25, %s44
      %s78 = ssub.s32 %s74, %s76
      %s79 = sor.u32 %s77, %s78
      %p80 = scmp.eq.s32.totalorder %s79, 0
      %s82 = sadd.s32 %s81, 1
      %s83 = scalar_select %p80, %s81, %s82
      %p86 = pneg %p80
      %p87 = scmp.eq.s32.totalorder %s18, 1
      %p88 = por %p86, %p87
      %p89 = scmp.ne.s32.totalorder %s81, %s84
      %p90 = scmp.eq.s32.totalorder %s18, 0
      %p91 = por %p89, %p90
      %p92 = scmp.ne.s32.totalorder %s81, %s84
      %p93 = scmp.eq.s32.totalorder %s23, 1
      %p94 = por %p92, %p93
      %p95 = scmp.ne.s32.totalorder %s84, %s85
      %p96 = scmp.eq.s32.totalorder %s23, 0
      %p97 = por %p95, %p96
      %p98 = scmp.ne.s32.totalorder %s84, %s85
      %p99 = scmp.eq.s32.totalorder %s24, 1
      %p100 = por %p98, %p99
      %p102 = scmp.ne.s32.totalorder %s85, %s101
      %p103 = scmp.eq.s32.totalorder %s24, 0
      %p104 = por %p102, %p103
      %p105 = scmp.lt.s32.totalorder %s27, %s26
      %s106 = scalar_select %p105, %s27, %s26
      %p107 = scmp.lt.s32.totalorder %s36, %s40
      %s108 = scalar_select %p107, %s36, %s40
      %s109 = ssub.s32 %s25, %s44
      %s110 = ssub.s32 %s106, %s108
      %s111 = sor.u32 %s109, %s110
      %p112 = scmp.eq.s32.totalorder %s111, 0
      %s114 = sadd.s32 %s113, 1
      %s115 = scalar_select %p112, %s113, %s114
      %p118 = pneg %p112
      %p119 = scmp.eq.s32.totalorder %s18, 1
      %p120 = por %p118, %p119
      %p121 = scmp.ne.s32.totalorder %s113, %s116
      %p122 = scmp.eq.s32.totalorder %s18, 0
      %p123 = por %p121, %p122
      %p124 = scmp.ne.s32.totalorder %s113, %s116
      %p125 = scmp.eq.s32.totalorder %s23, 1
      %p126 = por %p124, %p125
      %p127 = scmp.ne.s32.totalorder %s116, %s117
      %p128 = scmp.eq.s32.totalorder %s23, 0
      %p129 = por %p127, %p128
      %p130 = scmp.ne.s32.totalorder %s116, %s117
      %p131 = scmp.eq.s32.totalorder %s24, 1
      %p132 = por %p130, %p131
      %p134 = scmp.ne.s32.totalorder %s117, %s133
      %p135 = scmp.eq.s32.totalorder %s24, 0
      %p136 = por %p134, %p135
      %s137 = ssub.s32 %s25, %s44
      %s138 = ssub.s32 %s26, %s40
      %s139 = sor.u32 %s137, %s138
      %p140 = scmp.eq.s32.totalorder %s139, 0
      %s142 = sadd.s32 %s141, 1
      %s143 = scalar_select %p140, %s141, %s142
      %p146 = pneg %p140
      %p147 = scmp.eq.s32.totalorder %s18, 1
      %p148 = por %p146, %p147
      %p149 = scmp.ne.s32.totalorder %s141, %s144
      %p150 = scmp.eq.s32.totalorder %s18, 0
      %p151 = por %p149, %p150
      %p152 = scmp.ne.s32.totalorder %s141, %s144
      %p153 = scmp.eq.s32.totalorder %s23, 1
      %p154 = por %p152, %p153
      %p155 = scmp.ne.s32.totalorder %s144, %s145
      %p156 = scmp.eq.s32.totalorder %s23, 0
      %p157 = por %p155, %p156
      %p158 = scmp.ne.s32.totalorder %s144, %s145
      %p159 = scmp.eq.s32.totalorder %s24, 1
      %p160 = por %p158, %p159
      %p162 = scmp.ne.s32.totalorder %s145, %s161
      %p163 = scmp.eq.s32.totalorder %s24, 0
      %p164 = por %p162, %p163
      %p165 = scmp.le.s32.totalorder 1, %s18
      %p166 = scmp.lt.s32.totalorder %s18, 3
      %p167 = pnand %p165, %p166
      %p168 = pneg %p167
      // Predicated region
      $region9: #{tpu_custom_call.1} parent=5 // pred_check
        _
      $region10: #{tpu_custom_call.1} parent=5 // pred_check_branch
        %170 = sbr.rel (%p167) target = $region12
      $region11: #{tpu_custom_call.1} parent=5 // pred_region
        %s171 = ssub.s32 %s18, 1
      $region12: #{tpu_custom_call.1} parent=5 // pred_fallthru
        _
      %p172 = scmp.lt.s32.totalorder %s18, 2
      // Predicated region
      $region13: #{tpu_custom_call.1} parent=5 // pred_check
        %p173 = pneg %p172
      $region14: #{tpu_custom_call.1} parent=5 // pred_check_branch
        %175 = sbr.rel (%p173) target = $region16
      $region15: #{tpu_custom_call.1} parent=5 // pred_region
        // Predicated region
        $region17: #{tpu_custom_call.1} parent=15 // pred_check
          %p176 = pneg %p59
        $region18: #{tpu_custom_call.1} parent=15 // pred_check_branch
          %178 = sbr.rel (%p176) target = $region20
        $region19: #{tpu_custom_call.1} parent=15 // pred_region
          %s179 = sand.u32 %s49, 1
          %s180 = scalar_lea.sflag [#allocation6], %s179
          %s181 = sand.u32 %s49, 1
          %s182 = smul.addr %s181, 8
          %s183 = scalar_lea.vmem [#allocation5], %s182
          %s185 = ssub.s32 128, 128
          %186 = vsyncadd %s180, %s185
          %s187 = sadd.s32 %s26, %s25
          %s188 = smul.addr %s187, 128
          %s189 = scalar_lea.hbm %s0, %s188
          %s191 = sshll.u32 %s183, 4
          %s192 = int_to_ptr.vmem [resolvable:$true] %s191
          %194 = dma.hbm_to_vmem [thread:$0]  %s189, 128, %s192, %s180
        $region20: #{tpu_custom_call.1} parent=15 // pred_fallthru
          _
        // Predicated region
        $region21: #{tpu_custom_call.1} parent=15 // pred_check
          %p195 = pneg %p91
        $region22: #{tpu_custom_call.1} parent=15 // pred_check_branch
          %197 = sbr.rel (%p195) target = $region24
        $region23: #{tpu_custom_call.1} parent=15 // pred_region
          %s198 = sand.u32 %s18, 1
          %s199 = scalar_lea.sflag [#allocation9], %s198
          %s200 = sand.u32 %s81, 1
          %s201 = smul.addr %s200, 8
          %s202 = scalar_lea.vmem [#allocation8], %s201
          %p203 = scmp.lt.s32.totalorder %s27, %s26
          %s204 = scalar_select %p203, %s27, %s26
          %s206 = ssub.s32 128, 128
          %207 = vsyncadd %s199, %s206
          %s208 = sadd.s32 %s204, %s25
          %s209 = smul.addr %s208, 128
          %s210 = scalar_lea.hbm %s1, %s209
          %s212 = sshll.u32 %s202, 4
          %s213 = int_to_ptr.vmem [resolvable:$true] %s212
          %215 = dma.hbm_to_vmem [thread:$0]  %s210, 128, %s213, %s199
        $region24: #{tpu_custom_call.1} parent=15 // pred_fallthru
          _
        // Predicated region
        $region25: #{tpu_custom_call.1} parent=15 // pred_check
          %p216 = pneg %p123
        $region26: #{tpu_custom_call.1} parent=15 // pred_check_branch
          %218 = sbr.rel (%p216) target = $region28
        $region27: #{tpu_custom_call.1} parent=15 // pred_region
          %s219 = sand.u32 %s18, 1
          %s220 = scalar_lea.sflag [#allocation9], %s219
          %s221 = sand.u32 %s113, 1
          %s222 = smul.addr %s221, 8
          %s223 = scalar_lea.vmem [#allocation10], %s222
          %p224 = scmp.lt.s32.totalorder %s27, %s26
          %s225 = scalar_select %p224, %s27, %s26
          %s227 = ssub.s32 128, 128
          %228 = vsyncadd %s220, %s227
          %s229 = sadd.s32 %s225, %s25
          %s230 = smul.addr %s229, 128
          %s231 = scalar_lea.hbm %s2, %s230
          %s233 = sshll.u32 %s223, 4
          %s234 = int_to_ptr.vmem [resolvable:$true] %s233
          %236 = dma.hbm_to_vmem [thread:$0]  %s231, 128, %s234, %s220
        $region28: #{tpu_custom_call.1} parent=15 // pred_fallthru
          _
      $region16: #{tpu_custom_call.1} parent=5 // pred_fallthru
        _
      %p237 = scmp.le.s32.totalorder 1, %s18
      %p238 = scmp.lt.s32.totalorder %s18, 3
      %p239 = pnand %p237, %p238
      %p240 = pneg %p239
      // Predicated region
      $region29: #{tpu_custom_call.1} parent=5 // pred_check
        _
      $region30: #{tpu_custom_call.1} parent=5 // pred_check_branch
        %242 = sbr.rel (%p239) target = $region32
      $region31: #{tpu_custom_call.1} parent=5 // pred_region
        %s243 = ssub.s32 %s18, 1
        %s244 = sand.u32 %s52, 1
        %s245 = scalar_lea.sflag [#allocation6], %s244
        %s246 = sand.u32 %s52, 1
        %s247 = smul.addr %s246, 8
        %s248 = scalar_lea.vmem [#allocation5], %s247
        // Predicated region
        $region33: #{tpu_custom_call.1} parent=31 // pred_check
          %p249 = pneg %p65
        $region34: #{tpu_custom_call.1} parent=31 // pred_check_branch
          %251 = sbr.rel (%p249) target = $region36
        $region35: #{tpu_custom_call.1} parent=31 // pred_region
          %252 = dma.done %s245, 128
        $region36: #{tpu_custom_call.1} parent=31 // pred_fallthru
          _
        %s253 = sand.u32 %s23, 1
        %s254 = scalar_lea.sflag [#allocation9], %s253
        %s255 = sand.u32 %s84, 1
        %s256 = smul.addr %s255, 8
        %s257 = scalar_lea.vmem [#allocation8], %s256
        // Predicated region
        $region37: #{tpu_custom_call.1} parent=31 // pred_check
          %p258 = pneg %p97
        $region38: #{tpu_custom_call.1} parent=31 // pred_check_branch
          %260 = sbr.rel (%p258) target = $region40
        $region39: #{tpu_custom_call.1} parent=31 // pred_region
          %261 = dma.done %s254, 128
        $region40: #{tpu_custom_call.1} parent=31 // pred_fallthru
          _
        %s262 = sand.u32 %s23, 1
        %s263 = scalar_lea.sflag [#allocation9], %s262
        %s264 = sand.u32 %s116, 1
        %s265 = smul.addr %s264, 8
        %s266 = scalar_lea.vmem [#allocation10], %s265
        // Predicated region
        $region41: #{tpu_custom_call.1} parent=31 // pred_check
          %p267 = pneg %p129
        $region42: #{tpu_custom_call.1} parent=31 // pred_check_branch
          %269 = sbr.rel (%p267) target = $region44
        $region43: #{tpu_custom_call.1} parent=31 // pred_region
          %270 = dma.done %s263, 128
        $region44: #{tpu_custom_call.1} parent=31 // pred_fallthru
          _
        %s271 = sand.u32 %s52, 1
        %s272 = scalar_lea.sflag [#allocation6], %s271
        %s273 = sand.u32 %s52, 1
        %s274 = smul.addr %s273, 8
        %s275 = scalar_lea.vmem [#allocation5], %s274
        %p276 = pneg %p65
        %p277 = pneg %p62
        %s278 = sand.u32 %s23, 1
        %s279 = scalar_lea.sflag [#allocation9], %s278
        %s280 = sand.u32 %s84, 1
        %s281 = smul.addr %s280, 8
        %s282 = scalar_lea.vmem [#allocation8], %s281
        %p283 = pneg %p97
        %p284 = pneg %p94
        %s285 = sand.u32 %s23, 1
        %s286 = scalar_lea.sflag [#allocation9], %s285
        %s287 = sand.u32 %s116, 1
        %s288 = smul.addr %s287, 8
        %s289 = scalar_lea.vmem [#allocation10], %s288
        %p290 = pneg %p129
        %p291 = pneg %p126
        %p292 = pneg %p157
        %p293 = pneg %p154
        %s294 = sand.u32 %s144, 1
        %s295 = scalar_lea.sflag [#allocation7], %s294
        %s296 = sand.u32 %s144, 1
        %s297 = smul.addr %s296, 8
        %s298 = scalar_lea.vmem [#allocation11], %s297
        %p299 = scmp.lt.s32.totalorder %s30, %s29
        %s300 = scalar_select %p299, %s30, %s29
        %p301 = scmp.lt.s32.totalorder %s30, %s29
        %s302 = scalar_select %p301, %s30, %s29
        %p303 = scmp.eq.s32.totalorder %s30, 0
        // Predicated region
        $region45: #{tpu_custom_call.1} parent=31 // pred_check
          %p304 = pneg %p303
        $region46: #{tpu_custom_call.1} parent=31 // pred_check_branch
          %306 = sbr.rel (%p304) target = $region48
        $region47: #{tpu_custom_call.1} parent=31 // pred_region
          %vm307 = vcmask 7168
          %308 = vst.msk [vmem:[#allocation2] sm:$0xff] %vm307, -1e+30
          %309 = vst.msk [vmem:[#allocation2 + $0x8] sm:$0xff] %vm307, -1e+30
          %310 = vst.msk [vmem:[#allocation2 + $0x10] sm:$0xff] %vm307, -1e+30
          %311 = vst.msk [vmem:[#allocation2 + $0x18] sm:$0xff] %vm307, -1e+30
          %312 = vst.msk [vmem:[#allocation3] sm:$0xff] %vm307, 0.0
          %313 = vst.msk [vmem:[#allocation3 + $0x8] sm:$0xff] %vm307, 0.0
          %314 = vst.msk [vmem:[#allocation3 + $0x10] sm:$0xff] %vm307, 0.0
          %315 = vst.msk [vmem:[#allocation3 + $0x18] sm:$0xff] %vm307, 0.0
          %316 = vst [vmem:[#allocation4] sm:$0xff] 0.0
        $region48: #{tpu_custom_call.1} parent=31 // pred_fallthru
          _
        %p317 = scmp.lt.s32.totalorder %s30, %s29
        // Predicated region
        $region49: #{tpu_custom_call.1} parent=31 // pred_check
          %p318 = pneg %p317
        $region50: #{tpu_custom_call.1} parent=31 // pred_check_branch
          %320 = sbr.rel (%p318) target = $region52
        $region51: #{tpu_custom_call.1} parent=31 // pred_region
          %v321 = vld [vmem:[%s248] sm:$0xff]
          %v322 = vmul.f32 %v321, 0.17677669
          %v323 = vld [vmem:[%s257] sm:$0xff]
          %v324 = vld [vmem:[%s266] sm:$0xff]
          %vm325 = vcmask 261120
          %v327 = vsel %vm325, %v322, 0
          %v330 = vsel %vm325, %v323, 0
          %332 = vmatprep.subr.mxu0 0.0
          %333 = vmatpush1.xpose.msra.mxu0 %v330
          %334 = vmatprep.subr.mxu0 0.0
          %335 = vmatpush1.xpose.msra.mxu0 0.0
          %336 = vmatprep.subr.mxu0 0.0
          %337 = vmatpush1.xpose.msra.mxu0 0.0
          %338 = vmatprep.subr.mxu0 0.0
          %339 = vmatpush1.xpose.msra.mxu0 0.0
          %340 = vmatprep.subr.mxu0 0.0
          %341 = vmatpush1.xpose.msra.mxu0 0.0
          %342 = vmatprep.subr.mxu0 0.0
          %343 = vmatpush1.xpose.msra.mxu0 0.0
          %344 = vmatprep.subr.mxu0 0.0
          %345 = vmatpush1.xpose.msra.mxu0 0.0
          %346 = vmatprep.subr.mxu0 0.0
          %347 = vmatpush1.xpose.msra.mxu0 0.0
          %348 = vmatprep.subr.mxu0 0.0
          %349 = vmatpush1.xpose.msra.mxu0 0.0
          %350 = vmatprep.subr.mxu0 0.0
          %351 = vmatpush1.xpose.msra.mxu0 0.0
          %352 = vmatprep.subr.mxu0 0.0
          %353 = vmatpush1.xpose.msra.mxu0 0.0
          %354 = vmatprep.subr.mxu0 0.0
          %355 = vmatpush1.xpose.msra.mxu0 0.0
          %356 = vmatprep.subr.mxu0 0.0
          %357 = vmatpush1.xpose.msra.mxu0 0.0
          %358 = vmatprep.subr.mxu0 0.0
          %359 = vmatpush1.xpose.msra.mxu0 0.0
          %360 = vmatprep.subr.mxu0 0.0
          %361 = vmatpush1.xpose.msra.mxu0 0.0
          %362 = vmatprep.subr.mxu0 0.0
          %363 = vmatpush1.xpose.msra.mxu0 0.0
          %364 = vmatprep.subr.mxu0 0.0
          %365 = vmatpush1.xpose.msra.mxu0 0.0
          %366 = vmatprep.subr.mxu0 0.0
          %367 = vmatpush1.xpose.msra.mxu0 0.0
          %368 = vmatprep.subr.mxu0 0.0
          %369 = vmatpush1.xpose.msra.mxu0 0.0
          %370 = vmatprep.subr.mxu0 0.0
          %371 = vmatpush1.xpose.msra.mxu0 0.0
          %372 = vmatprep.subr.mxu0 0.0
          %373 = vmatpush1.xpose.msra.mxu0 0.0
          %374 = vmatprep.subr.mxu0 0.0
          %375 = vmatpush1.xpose.msra.mxu0 0.0
          %376 = vmatprep.subr.mxu0 0.0
          %377 = vmatpush1.xpose.msra.mxu0 0.0
          %378 = vmatprep.subr.mxu0 0.0
          %379 = vmatpush1.xpose.msra.mxu0 0.0
          %380 = vmatprep.subr.mxu0 0.0
          %381 = vmatpush1.xpose.msra.mxu0 0.0
          %382 = vmatprep.subr.mxu0 0.0
          %383 = vmatpush1.xpose.msra.mxu0 0.0
          %384 = vmatprep.subr.mxu0 0.0
          %385 = vmatpush1.xpose.msra.mxu0 0.0
          %386 = vmatprep.subr.mxu0 0.0
          %387 = vmatpush1.xpose.msra.mxu0 0.0
          %388 = vmatprep.subr.mxu0 0.0
          %389 = vmatpush1.xpose.msra.mxu0 0.0
          %390 = vmatprep.subr.mxu0 0.0
          %391 = vmatpush1.xpose.msra.mxu0 0.0
          %392 = vmatprep.subr.mxu0 0.0
          %393 = vmatpush1.xpose.msra.mxu0 0.0
          %394 = vmatprep.subr.mxu0 0.0
          %395 = vmatpush1.xpose.msra.mxu0 0.0
          %396 = vmatprep.mubr.f32.mxu0 0.0
          %397 = vmatmul.mubr.f32.gmra.mrb[0].mxu0 %v327
          %v398 = vpop.f32.mrb[0].mxu0
          %v399 = vadd.f32 0.0, %v398
          %v400 = vpop.f32.mrb[0].mxu0
          %401 = vdwg.mxu0
          %v402 = vld [vmem:[#allocation2] sm:$0xff]
          %vm403 = vcmask 64512
          %v404 = vsel %vm403, %v399, -inf
          %405 = vmax.xlane.f32.xlu0 %v404
          %v406 = vpop.xlane.xlu0 %405
          %v407 = vmax.f32 %v402, %v406
          %v408 = vsub.f32 %v402, %v407
          %v409 = vmul.f32 %v408, 1.442695
          %v410 = vpow.pop %v409
          %412 = vset.pattern.permute.xlu0 0
          %413 = vperm.xlu0 %412, %v407
          %v414 = vpop.permute.xlu0 %413
          %v416 = vsub.f32 %v399, %v414
          %v417 = vmul.f32 %v416, 1.442695
          %v418 = vpow.pop %v417
          %v419 = vld [vmem:[#allocation3] sm:$0xff]
          %v420 = vmul.f32 %v410, %v419
          %v421 = vsel %vm403, %v418, 0.0
          %422 = vadd.xlane.f32.xlu0 %v421
          %v423 = vpop.xlane.xlu0 %422
          %v424 = vadd.f32 %v420, %v423
          %vm425 = vcmask 7168
          %426 = vst.msk [vmem:[#allocation3] sm:$0xff] %vm425, %v424
          %427 = vst.msk [vmem:[#allocation2] sm:$0xff] %vm425, %v407
          %v429 = vsel %vm403, %v418, 0
          %431 = vmatprep.subr.mxu0 0.0
          %432 = vmatpush1.msra.mxu0 %v324
          %433 = vmatprep.subr.mxu0 0.0
          %434 = vmatpush1.msra.mxu0 0.0
          %435 = vmatprep.subr.mxu0 0.0
          %436 = vmatpush1.msra.mxu0 0.0
          %437 = vmatprep.subr.mxu0 0.0
          %438 = vmatpush1.msra.mxu0 0.0
          %439 = vmatprep.subr.mxu0 0.0
          %440 = vmatpush1.msra.mxu0 0.0
          %441 = vmatprep.subr.mxu0 0.0
          %442 = vmatpush1.msra.mxu0 0.0
          %443 = vmatprep.subr.mxu0 0.0
          %444 = vmatpush1.msra.mxu0 0.0
          %445 = vmatprep.subr.mxu0 0.0
          %446 = vmatpush1.msra.mxu0 0.0
          %447 = vmatprep.subr.mxu0 0.0
          %448 = vmatpush1.msra.mxu0 0.0
          %449 = vmatprep.subr.mxu0 0.0
          %450 = vmatpush1.msra.mxu0 0.0
          %451 = vmatprep.subr.mxu0 0.0
          %452 = vmatpush1.msra.mxu0 0.0
          %453 = vmatprep.subr.mxu0 0.0
          %454 = vmatpush1.msra.mxu0 0.0
          %455 = vmatprep.subr.mxu0 0.0
          %456 = vmatpush1.msra.mxu0 0.0
          %457 = vmatprep.subr.mxu0 0.0
          %458 = vmatpush1.msra.mxu0 0.0
          %459 = vmatprep.subr.mxu0 0.0
          %460 = vmatpush1.msra.mxu0 0.0
          %461 = vmatprep.subr.mxu0 0.0
          %462 = vmatpush1.msra.mxu0 0.0
          %463 = vmatprep.subr.mxu0 0.0
          %464 = vmatpush1.msra.mxu0 0.0
          %465 = vmatprep.subr.mxu0 0.0
          %466 = vmatpush1.msra.mxu0 0.0
          %467 = vmatprep.subr.mxu0 0.0
          %468 = vmatpush1.msra.mxu0 0.0
          %469 = vmatprep.subr.mxu0 0.0
          %470 = vmatpush1.msra.mxu0 0.0
          %471 = vmatprep.subr.mxu0 0.0
          %472 = vmatpush1.msra.mxu0 0.0
          %473 = vmatprep.subr.mxu0 0.0
          %474 = vmatpush1.msra.mxu0 0.0
          %475 = vmatprep.subr.mxu0 0.0
          %476 = vmatpush1.msra.mxu0 0.0
          %477 = vmatprep.subr.mxu0 0.0
          %478 = vmatpush1.msra.mxu0 0.0
          %479 = vmatprep.subr.mxu0 0.0
          %480 = vmatpush1.msra.mxu0 0.0
          %481 = vmatprep.subr.mxu0 0.0
          %482 = vmatpush1.msra.mxu0 0.0
          %483 = vmatprep.subr.mxu0 0.0
          %484 = vmatpush1.msra.mxu0 0.0
          %485 = vmatprep.subr.mxu0 0.0
          %486 = vmatpush1.msra.mxu0 0.0
          %487 = vmatprep.subr.mxu0 0.0
          %488 = vmatpush1.msra.mxu0 0.0
          %489 = vmatprep.subr.mxu0 0.0
          %490 = vmatpush1.msra.mxu0 0.0
          %491 = vmatprep.subr.mxu0 0.0
          %492 = vmatpush1.msra.mxu0 0.0
          %493 = vmatprep.subr.mxu0 0.0
          %494 = vmatpush1.msra.mxu0 0.0
          %495 = vmatprep.mubr.f32.mxu0 0.0
          %496 = vmatmul.mubr.f32.gmra.mrb[0].mxu0 %v429
          %v497 = vpop.f32.mrb[0].mxu0
          %v498 = vadd.f32 0.0, %v497
          %v499 = vpop.f32.mrb[0].mxu0
          %500 = vdwg.mxu0
          %502 = vset.pattern.permute.xlu0 0
          %503 = vperm.xlu0 %502, %v410
          %v504 = vpop.permute.xlu0 %503
          %v506 = vld [vmem:[%s248] sm:$0xff]
          %v507 = vmul.f32 %v506, 0.17677669
          %v508 = vld [vmem:[%s257] sm:$0xff]
          %v509 = vld [vmem:[%s266] sm:$0xff]
          %511 = vrot.lane.b32.xlu0 %v507, 96
          %v512 = vpop.permute.xlu0 %511
          %514 = vrot.lane.b32.xlu0 %v508, 96
          %v515 = vpop.permute.xlu0 %514
          %v516 = vsel %vm325, %v512, 0
          %v518 = vsel %vm325, %v515, 0
          %520 = vmatprep.subr.mxu0 0.0
          %521 = vmatpush1.xpose.msra.mxu0 %v518
          %522 = vmatprep.subr.mxu0 0.0
          %523 = vmatpush1.xpose.msra.mxu0 0.0
          %524 = vmatprep.subr.mxu0 0.0
          %525 = vmatpush1.xpose.msra.mxu0 0.0
          %526 = vmatprep.subr.mxu0 0.0
          %527 = vmatpush1.xpose.msra.mxu0 0.0
          %528 = vmatprep.subr.mxu0 0.0
          %529 = vmatpush1.xpose.msra.mxu0 0.0
          %530 = vmatprep.subr.mxu0 0.0
          %531 = vmatpush1.xpose.msra.mxu0 0.0
          %532 = vmatprep.subr.mxu0 0.0
          %533 = vmatpush1.xpose.msra.mxu0 0.0
          %534 = vmatprep.subr.mxu0 0.0
          %535 = vmatpush1.xpose.msra.mxu0 0.0
          %536 = vmatprep.subr.mxu0 0.0
          %537 = vmatpush1.xpose.msra.mxu0 0.0
          %538 = vmatprep.subr.mxu0 0.0
          %539 = vmatpush1.xpose.msra.mxu0 0.0
          %540 = vmatprep.subr.mxu0 0.0
          %541 = vmatpush1.xpose.msra.mxu0 0.0
          %542 = vmatprep.subr.mxu0 0.0
          %543 = vmatpush1.xpose.msra.mxu0 0.0
          %544 = vmatprep.subr.mxu0 0.0
          %545 = vmatpush1.xpose.msra.mxu0 0.0
          %546 = vmatprep.subr.mxu0 0.0
          %547 = vmatpush1.xpose.msra.mxu0 0.0
          %548 = vmatprep.subr.mxu0 0.0
          %549 = vmatpush1.xpose.msra.mxu0 0.0
          %550 = vmatprep.subr.mxu0 0.0
          %551 = vmatpush1.xpose.msra.mxu0 0.0
          %552 = vmatprep.subr.mxu0 0.0
          %553 = vmatpush1.xpose.msra.mxu0 0.0
          %554 = vmatprep.subr.mxu0 0.0
          %555 = vmatpush1.xpose.msra.mxu0 0.0
          %556 = vmatprep.subr.mxu0 0.0
          %557 = vmatpush1.xpose.msra.mxu0 0.0
          %558 = vmatprep.subr.mxu0 0.0
          %559 = vmatpush1.xpose.msra.mxu0 0.0
          %560 = vmatprep.subr.mxu0 0.0
          %561 = vmatpush1.xpose.msra.mxu0 0.0
          %562 = vmatprep.subr.mxu0 0.0
          %563 = vmatpush1.xpose.msra.mxu0 0.0
          %564 = vmatprep.subr.mxu0 0.0
          %565 = vmatpush1.xpose.msra.mxu0 0.0
          %566 = vmatprep.subr.mxu0 0.0
          %567 = vmatpush1.xpose.msra.mxu0 0.0
          %568 = vmatprep.subr.mxu0 0.0
          %569 = vmatpush1.xpose.msra.mxu0 0.0
          %570 = vmatprep.subr.mxu0 0.0
          %571 = vmatpush1.xpose.msra.mxu0 0.0
          %572 = vmatprep.subr.mxu0 0.0
          %573 = vmatpush1.xpose.msra.mxu0 0.0
          %574 = vmatprep.subr.mxu0 0.0
          %575 = vmatpush1.xpose.msra.mxu0 0.0
          %576 = vmatprep.subr.mxu0 0.0
          %577 = vmatpush1.xpose.msra.mxu0 0.0
          %578 = vmatprep.subr.mxu0 0.0
          %579 = vmatpush1.xpose.msra.mxu0 0.0
          %580 = vmatprep.subr.mxu0 0.0
          %581 = vmatpush1.xpose.msra.mxu0 0.0
          %582 = vmatprep.subr.mxu0 0.0
          %583 = vmatpush1.xpose.msra.mxu0 0.0
          %584 = vmatprep.mubr.f32.mxu0 0.0
          %585 = vmatmul.mubr.f32.gmra.mrb[0].mxu0 %v516
          %v586 = vpop.f32.mrb[0].mxu0
          %v587 = vadd.f32 0.0, %v586
          %v588 = vpop.f32.mrb[0].mxu0
          %589 = vdwg.mxu0
          %s590 = scalar_lea.vmem [#allocation2], 8
          %v591 = vld [vmem:[%s590] sm:$0xff]
          %v592 = vsel %vm403, %v587, -inf
          %593 = vmax.xlane.f32.xlu0 %v592
          %v594 = vpop.xlane.xlu0 %593
          %v595 = vmax.f32 %v591, %v594
          %v596 = vsub.f32 %v591, %v595
          %v597 = vmul.f32 %v596, 1.442695
          %v598 = vpow.pop %v597
          %600 = vset.pattern.permute.xlu0 0
          %601 = vperm.xlu0 %600, %v595
          %v602 = vpop.permute.xlu0 %601
          %v604 = vsub.f32 %v587, %v602
          %v605 = vmul.f32 %v604, 1.442695
          %v606 = vpow.pop %v605
          %s607 = scalar_lea.vmem [#allocation3], 8
          %v608 = vld [vmem:[%s607] sm:$0xff]
          %v609 = vmul.f32 %v598, %v608
          %v610 = vsel %vm403, %v606, 0.0
          %611 = vadd.xlane.f32.xlu0 %v610
          %v612 = vpop.xlane.xlu0 %611
          %v613 = vadd.f32 %v609, %v612
          %614 = vst.msk [vmem:[%s607] sm:$0xff] %vm425, %v613
          %615 = vst.msk [vmem:[%s590] sm:$0xff] %vm425, %v595
          %617 = vrot.lane.b32.xlu0 %v509, 96
          %v618 = vpop.permute.xlu0 %617
          %v621 = vsel %vm403, %v606, 0
          %623 = vmatprep.subr.mxu0 0.0
          %624 = vmatpush1.msra.mxu0 %v618
          %625 = vmatprep.subr.mxu0 0.0
          %626 = vmatpush1.msra.mxu0 0.0
          %627 = vmatprep.subr.mxu0 0.0
          %628 = vmatpush1.msra.mxu0 0.0
          %629 = vmatprep.subr.mxu0 0.0
          %630 = vmatpush1.msra.mxu0 0.0
          %631 = vmatprep.subr.mxu0 0.0
          %632 = vmatpush1.msra.mxu0 0.0
          %633 = vmatprep.subr.mxu0 0.0
          %634 = vmatpush1.msra.mxu0 0.0
          %635 = vmatprep.subr.mxu0 0.0
          %636 = vmatpush1.msra.mxu0 0.0
          %637 = vmatprep.subr.mxu0 0.0
          %638 = vmatpush1.msra.mxu0 0.0
          %639 = vmatprep.subr.mxu0 0.0
          %640 = vmatpush1.msra.mxu0 0.0
          %641 = vmatprep.subr.mxu0 0.0
          %642 = vmatpush1.msra.mxu0 0.0
          %643 = vmatprep.subr.mxu0 0.0
          %644 = vmatpush1.msra.mxu0 0.0
          %645 = vmatprep.subr.mxu0 0.0
          %646 = vmatpush1.msra.mxu0 0.0
          %647 = vmatprep.subr.mxu0 0.0
          %648 = vmatpush1.msra.mxu0 0.0
          %649 = vmatprep.subr.mxu0 0.0
          %650 = vmatpush1.msra.mxu0 0.0
          %651 = vmatprep.subr.mxu0 0.0
          %652 = vmatpush1.msra.mxu0 0.0
          %653 = vmatprep.subr.mxu0 0.0
          %654 = vmatpush1.msra.mxu0 0.0
          %655 = vmatprep.subr.mxu0 0.0
          %656 = vmatpush1.msra.mxu0 0.0
          %657 = vmatprep.subr.mxu0 0.0
          %658 = vmatpush1.msra.mxu0 0.0
          %659 = vmatprep.subr.mxu0 0.0
          %660 = vmatpush1.msra.mxu0 0.0
          %661 = vmatprep.subr.mxu0 0.0
          %662 = vmatpush1.msra.mxu0 0.0
          %663 = vmatprep.subr.mxu0 0.0
          %664 = vmatpush1.msra.mxu0 0.0
          %665 = vmatprep.subr.mxu0 0.0
          %666 = vmatpush1.msra.mxu0 0.0
          %667 = vmatprep.subr.mxu0 0.0
          %668 = vmatpush1.msra.mxu0 0.0
          %669 = vmatprep.subr.mxu0 0.0
          %670 = vmatpush1.msra.mxu0 0.0
          %671 = vmatprep.subr.mxu0 0.0
          %672 = vmatpush1.msra.mxu0 0.0
          %673 = vmatprep.subr.mxu0 0.0
          %674 = vmatpush1.msra.mxu0 0.0
          %675 = vmatprep.subr.mxu0 0.0
          %676 = vmatpush1.msra.mxu0 0.0
          %677 = vmatprep.subr.mxu0 0.0
          %678 = vmatpush1.msra.mxu0 0.0
          %679 = vmatprep.subr.mxu0 0.0
          %680 = vmatpush1.msra.mxu0 0.0
          %681 = vmatprep.subr.mxu0 0.0
          %682 = vmatpush1.msra.mxu0 0.0
          %683 = vmatprep.subr.mxu0 0.0
          %684 = vmatpush1.msra.mxu0 0.0
          %685 = vmatprep.subr.mxu0 0.0
          %686 = vmatpush1.msra.mxu0 0.0
          %687 = vmatprep.mubr.f32.mxu0 0.0
          %688 = vmatmul.mubr.f32.gmra.mrb[0].mxu0 %v621
          %v689 = vpop.f32.mrb[0].mxu0
          %v690 = vadd.f32 0.0, %v689
          %v691 = vpop.f32.mrb[0].mxu0
          %692 = vdwg.mxu0
          %694 = vset.pattern.permute.xlu0 0
          %695 = vperm.xlu0 %694, %v598
          %v696 = vpop.permute.xlu0 %695
          %v698 = vld [vmem:[%s248] sm:$0xff]
          %v699 = vmul.f32 %v698, 0.17677669
          %v700 = vld [vmem:[%s257] sm:$0xff]
          %v701 = vld [vmem:[%s266] sm:$0xff]
          %703 = vrot.lane.b32.xlu0 %v699, 64
          %v704 = vpop.permute.xlu0 %703
          %706 = vrot.lane.b32.xlu0 %v700, 64
          %v707 = vpop.permute.xlu0 %706
          %v708 = vsel %vm325, %v704, 0
          %v710 = vsel %vm325, %v707, 0
          %712 = vmatprep.subr.mxu0 0.0
          %713 = vmatpush1.xpose.msra.mxu0 %v710
          %714 = vmatprep.subr.mxu0 0.0
          %715 = vmatpush1.xpose.msra.mxu0 0.0
          %716 = vmatprep.subr.mxu0 0.0
          %717 = vmatpush1.xpose.msra.mxu0 0.0
          %718 = vmatprep.subr.mxu0 0.0
          %719 = vmatpush1.xpose.msra.mxu0 0.0
          %720 = vmatprep.subr.mxu0 0.0
          %721 = vmatpush1.xpose.msra.mxu0 0.0
          %722 = vmatprep.subr.mxu0 0.0
          %723 = vmatpush1.xpose.msra.mxu0 0.0
          %724 = vmatprep.subr.mxu0 0.0
          %725 = vmatpush1.xpose.msra.mxu0 0.0
          %726 = vmatprep.subr.mxu0 0.0
          %727 = vmatpush1.xpose.msra.mxu0 0.0
          %728 = vmatprep.subr.mxu0 0.0
          %729 = vmatpush1.xpose.msra.mxu0 0.0
          %730 = vmatprep.subr.mxu0 0.0
          %731 = vmatpush1.xpose.msra.mxu0 0.0
          %732 = vmatprep.subr.mxu0 0.0
          %733 = vmatpush1.xpose.msra.mxu0 0.0
          %734 = vmatprep.subr.mxu0 0.0
          %735 = vmatpush1.xpose.msra.mxu0 0.0
          %736 = vmatprep.subr.mxu0 0.0
          %737 = vmatpush1.xpose.msra.mxu0 0.0
          %738 = vmatprep.subr.mxu0 0.0
          %739 = vmatpush1.xpose.msra.mxu0 0.0
          %740 = vmatprep.subr.mxu0 0.0
          %741 = vmatpush1.xpose.msra.mxu0 0.0
          %742 = vmatprep.subr.mxu0 0.0
          %743 = vmatpush1.xpose.msra.mxu0 0.0
          %744 = vmatprep.subr.mxu0 0.0
          %745 = vmatpush1.xpose.msra.mxu0 0.0
          %746 = vmatprep.subr.mxu0 0.0
          %747 = vmatpush1.xpose.msra.mxu0 0.0
          %748 = vmatprep.subr.mxu0 0.0
          %749 = vmatpush1.xpose.msra.mxu0 0.0
          %750 = vmatprep.subr.mxu0 0.0
          %751 = vmatpush1.xpose.msra.mxu0 0.0
          %752 = vmatprep.subr.mxu0 0.0
          %753 = vmatpush1.xpose.msra.mxu0 0.0
          %754 = vmatprep.subr.mxu0 0.0
          %755 = vmatpush1.xpose.msra.mxu0 0.0
          %756 = vmatprep.subr.mxu0 0.0
          %757 = vmatpush1.xpose.msra.mxu0 0.0
          %758 = vmatprep.subr.mxu0 0.0
          %759 = vmatpush1.xpose.msra.mxu0 0.0
          %760 = vmatprep.subr.mxu0 0.0
          %761 = vmatpush1.xpose.msra.mxu0 0.0
          %762 = vmatprep.subr.mxu0 0.0
          %763 = vmatpush1.xpose.msra.mxu0 0.0
          %764 = vmatprep.subr.mxu0 0.0
          %765 = vmatpush1.xpose.msra.mxu0 0.0
          %766 = vmatprep.subr.mxu0 0.0
          %767 = vmatpush1.xpose.msra.mxu0 0.0
          %768 = vmatprep.subr.mxu0 0.0
          %769 = vmatpush1.xpose.msra.mxu0 0.0
          %770 = vmatprep.subr.mxu0 0.0
          %771 = vmatpush1.xpose.msra.mxu0 0.0
          %772 = vmatprep.subr.mxu0 0.0
          %773 = vmatpush1.xpose.msra.mxu0 0.0
          %774 = vmatprep.subr.mxu0 0.0
          %775 = vmatpush1.xpose.msra.mxu0 0.0
          %776 = vmatprep.mubr.f32.mxu0 0.0
          %777 = vmatmul.mubr.f32.gmra.mrb[0].mxu0 %v708
          %v778 = vpop.f32.mrb[0].mxu0
          %v779 = vadd.f32 0.0, %v778
          %v780 = vpop.f32.mrb[0].mxu0
          %781 = vdwg.mxu0
          %s782 = scalar_lea.vmem [#allocation2], 16
          %v783 = vld [vmem:[%s782] sm:$0xff]
          %v784 = vsel %vm403, %v779, -inf
          %785 = vmax.xlane.f32.xlu0 %v784
          %v786 = vpop.xlane.xlu0 %785
          %v787 = vmax.f32 %v783, %v786
          %v788 = vsub.f32 %v783, %v787
          %v789 = vmul.f32 %v788, 1.442695
          %v790 = vpow.pop %v789
          %792 = vset.pattern.permute.xlu0 0
          %793 = vperm.xlu0 %792, %v787
          %v794 = vpop.permute.xlu0 %793
          %v796 = vsub.f32 %v779, %v794
          %v797 = vmul.f32 %v796, 1.442695
          %v798 = vpow.pop %v797
          %s799 = scalar_lea.vmem [#allocation3], 16
          %v800 = vld [vmem:[%s799] sm:$0xff]
          %v801 = vmul.f32 %v790, %v800
          %v802 = vsel %vm403, %v798, 0.0
          %803 = vadd.xlane.f32.xlu0 %v802
          %v804 = vpop.xlane.xlu0 %803
          %v805 = vadd.f32 %v801, %v804
          %806 = vst.msk [vmem:[%s799] sm:$0xff] %vm425, %v805
          %807 = vst.msk [vmem:[%s782] sm:$0xff] %vm425, %v787
          %809 = vrot.lane.b32.xlu0 %v701, 64
          %v810 = vpop.permute.xlu0 %809
          %v813 = vsel %vm403, %v798, 0
          %815 = vmatprep.subr.mxu0 0.0
          %816 = vmatpush1.msra.mxu0 %v810
          %817 = vmatprep.subr.mxu0 0.0
          %818 = vmatpush1.msra.mxu0 0.0
          %819 = vmatprep.subr.mxu0 0.0
          %820 = vmatpush1.msra.mxu0 0.0
          %821 = vmatprep.subr.mxu0 0.0
          %822 = vmatpush1.msra.mxu0 0.0
          %823 = vmatprep.subr.mxu0 0.0
          %824 = vmatpush1.msra.mxu0 0.0
          %825 = vmatprep.subr.mxu0 0.0
          %826 = vmatpush1.msra.mxu0 0.0
          %827 = vmatprep.subr.mxu0 0.0
          %828 = vmatpush1.msra.mxu0 0.0
          %829 = vmatprep.subr.mxu0 0.0
          %830 = vmatpush1.msra.mxu0 0.0
          %831 = vmatprep.subr.mxu0 0.0
          %832 = vmatpush1.msra.mxu0 0.0
          %833 = vmatprep.subr.mxu0 0.0
          %834 = vmatpush1.msra.mxu0 0.0
          %835 = vmatprep.subr.mxu0 0.0
          %836 = vmatpush1.msra.mxu0 0.0
          %837 = vmatprep.subr.mxu0 0.0
          %838 = vmatpush1.msra.mxu0 0.0
          %839 = vmatprep.subr.mxu0 0.0
          %840 = vmatpush1.msra.mxu0 0.0
          %841 = vmatprep.subr.mxu0 0.0
          %842 = vmatpush1.msra.mxu0 0.0
          %843 = vmatprep.subr.mxu0 0.0
          %844 = vmatpush1.msra.mxu0 0.0
          %845 = vmatprep.subr.mxu0 0.0
          %846 = vmatpush1.msra.mxu0 0.0
          %847 = vmatprep.subr.mxu0 0.0
          %848 = vmatpush1.msra.mxu0 0.0
          %849 = vmatprep.subr.mxu0 0.0
          %850 = vmatpush1.msra.mxu0 0.0
          %851 = vmatprep.subr.mxu0 0.0
          %852 = vmatpush1.msra.mxu0 0.0
          %853 = vmatprep.subr.mxu0 0.0
          %854 = vmatpush1.msra.mxu0 0.0
          %855 = vmatprep.subr.mxu0 0.0
          %856 = vmatpush1.msra.mxu0 0.0
          %857 = vmatprep.subr.mxu0 0.0
          %858 = vmatpush1.msra.mxu0 0.0
          %859 = vmatprep.subr.mxu0 0.0
          %860 = vmatpush1.msra.mxu0 0.0
          %861 = vmatprep.subr.mxu0 0.0
          %862 = vmatpush1.msra.mxu0 0.0
          %863 = vmatprep.subr.mxu0 0.0
          %864 = vmatpush1.msra.mxu0 0.0
          %865 = vmatprep.subr.mxu0 0.0
          %866 = vmatpush1.msra.mxu0 0.0
          %867 = vmatprep.subr.mxu0 0.0
          %868 = vmatpush1.msra.mxu0 0.0
          %869 = vmatprep.subr.mxu0 0.0
          %870 = vmatpush1.msra.mxu0 0.0
          %871 = vmatprep.subr.mxu0 0.0
          %872 = vmatpush1.msra.mxu0 0.0
          %873 = vmatprep.subr.mxu0 0.0
          %874 = vmatpush1.msra.mxu0 0.0
          %875 = vmatprep.subr.mxu0 0.0
          %876 = vmatpush1.msra.mxu0 0.0
          %877 = vmatprep.subr.mxu0 0.0
          %878 = vmatpush1.msra.mxu0 0.0
          %879 = vmatprep.mubr.f32.mxu0 0.0
          %880 = vmatmul.mubr.f32.gmra.mrb[0].mxu0 %v813
          %v881 = vpop.f32.mrb[0].mxu0
          %v882 = vadd.f32 0.0, %v881
          %v883 = vpop.f32.mrb[0].mxu0
          %884 = vdwg.mxu0
          %886 = vset.pattern.permute.xlu0 0
          %887 = vperm.xlu0 %886, %v790
          %v888 = vpop.permute.xlu0 %887
          %v890 = vld [vmem:[%s248] sm:$0xff]
          %v891 = vmul.f32 %v890, 0.17677669
          %v892 = vld [vmem:[%s257] sm:$0xff]
          %v893 = vld [vmem:[%s266] sm:$0xff]
          %895 = vrot.lane.b32.xlu0 %v891, 32
          %v896 = vpop.permute.xlu0 %895
          %898 = vrot.lane.b32.xlu0 %v892, 32
          %v899 = vpop.permute.xlu0 %898
          %v900 = vsel %vm325, %v896, 0
          %v902 = vsel %vm325, %v899, 0
          %904 = vmatprep.subr.mxu0 0.0
          %905 = vmatpush1.xpose.msra.mxu0 %v902
          %906 = vmatprep.subr.mxu0 0.0
          %907 = vmatpush1.xpose.msra.mxu0 0.0
          %908 = vmatprep.subr.mxu0 0.0
          %909 = vmatpush1.xpose.msra.mxu0 0.0
          %910 = vmatprep.subr.mxu0 0.0
          %911 = vmatpush1.xpose.msra.mxu0 0.0
          %912 = vmatprep.subr.mxu0 0.0
          %913 = vmatpush1.xpose.msra.mxu0 0.0
          %914 = vmatprep.subr.mxu0 0.0
          %915 = vmatpush1.xpose.msra.mxu0 0.0
          %916 = vmatprep.subr.mxu0 0.0
          %917 = vmatpush1.xpose.msra.mxu0 0.0
          %918 = vmatprep.subr.mxu0 0.0
          %919 = vmatpush1.xpose.msra.mxu0 0.0
          %920 = vmatprep.subr.mxu0 0.0
          %921 = vmatpush1.xpose.msra.mxu0 0.0
          %922 = vmatprep.subr.mxu0 0.0
          %923 = vmatpush1.xpose.msra.mxu0 0.0
          %924 = vmatprep.subr.mxu0 0.0
          %925 = vmatpush1.xpose.msra.mxu0 0.0
          %926 = vmatprep.subr.mxu0 0.0
          %927 = vmatpush1.xpose.msra.mxu0 0.0
          %928 = vmatprep.subr.mxu0 0.0
          %929 = vmatpush1.xpose.msra.mxu0 0.0
          %930 = vmatprep.subr.mxu0 0.0
          %931 = vmatpush1.xpose.msra.mxu0 0.0
          %932 = vmatprep.subr.mxu0 0.0
          %933 = vmatpush1.xpose.msra.mxu0 0.0
          %934 = vmatprep.subr.mxu0 0.0
          %935 = vmatpush1.xpose.msra.mxu0 0.0
          %936 = vmatprep.subr.mxu0 0.0
          %937 = vmatpush1.xpose.msra.mxu0 0.0
          %938 = vmatprep.subr.mxu0 0.0
          %939 = vmatpush1.xpose.msra.mxu0 0.0
          %940 = vmatprep.subr.mxu0 0.0
          %941 = vmatpush1.xpose.msra.mxu0 0.0
          %942 = vmatprep.subr.mxu0 0.0
          %943 = vmatpush1.xpose.msra.mxu0 0.0
          %944 = vmatprep.subr.mxu0 0.0
          %945 = vmatpush1.xpose.msra.mxu0 0.0
          %946 = vmatprep.subr.mxu0 0.0
          %947 = vmatpush1.xpose.msra.mxu0 0.0
          %948 = vmatprep.subr.mxu0 0.0
          %949 = vmatpush1.xpose.msra.mxu0 0.0
          %950 = vmatprep.subr.mxu0 0.0
          %951 = vmatpush1.xpose.msra.mxu0 0.0
          %952 = vmatprep.subr.mxu0 0.0
          %953 = vmatpush1.xpose.msra.mxu0 0.0
          %954 = vmatprep.subr.mxu0 0.0
          %955 = vmatpush1.xpose.msra.mxu0 0.0
          %956 = vmatprep.subr.mxu0 0.0
          %957 = vmatpush1.xpose.msra.mxu0 0.0
          %958 = vmatprep.subr.mxu0 0.0
          %959 = vmatpush1.xpose.msra.mxu0 0.0
          %960 = vmatprep.subr.mxu0 0.0
          %961 = vmatpush1.xpose.msra.mxu0 0.0
          %962 = vmatprep.subr.mxu0 0.0
          %963 = vmatpush1.xpose.msra.mxu0 0.0
          %964 = vmatprep.subr.mxu0 0.0
          %965 = vmatpush1.xpose.msra.mxu0 0.0
          %966 = vmatprep.subr.mxu0 0.0
          %967 = vmatpush1.xpose.msra.mxu0 0.0
          %968 = vmatprep.mubr.f32.mxu0 0.0
          %969 = vmatmul.mubr.f32.gmra.mrb[0].mxu0 %v900
          %v970 = vpop.f32.mrb[0].mxu0
          %v971 = vadd.f32 0.0, %v970
          %v972 = vpop.f32.mrb[0].mxu0
          %973 = vdwg.mxu0
          %s974 = scalar_lea.vmem [#allocation2], 24
          %v975 = vld [vmem:[%s974] sm:$0xff]
          %v976 = vsel %vm403, %v971, -inf
          %977 = vmax.xlane.f32.xlu0 %v976
          %v978 = vpop.xlane.xlu0 %977
          %v979 = vmax.f32 %v975, %v978
          %v980 = vsub.f32 %v975, %v979
          %v981 = vmul.f32 %v980, 1.442695
          %v982 = vpow.pop %v981
          %984 = vset.pattern.permute.xlu0 0
          %985 = vperm.xlu0 %984, %v979
          %v986 = vpop.permute.xlu0 %985
          %v988 = vsub.f32 %v971, %v986
          %v989 = vmul.f32 %v988, 1.442695
          %v990 = vpow.pop %v989
          %s991 = scalar_lea.vmem [#allocation3], 24
          %v992 = vld [vmem:[%s991] sm:$0xff]
          %v993 = vmul.f32 %v982, %v992
          %v994 = vsel %vm403, %v990, 0.0
          %995 = vadd.xlane.f32.xlu0 %v994
          %v996 = vpop.xlane.xlu0 %995
          %v997 = vadd.f32 %v993, %v996
          %998 = vst.msk [vmem:[%s991] sm:$0xff] %vm425, %v997
          %999 = vst.msk [vmem:[%s974] sm:$0xff] %vm425, %v979
          %1001 = vrot.lane.b32.xlu0 %v893, 32
          %v1002 = vpop.permute.xlu0 %1001
          %v1005 = vsel %vm403, %v990, 0
          %1007 = vmatprep.subr.mxu0 0.0
          %1008 = vmatpush1.msra.mxu0 %v1002
          %1009 = vmatprep.subr.mxu0 0.0
          %1010 = vmatpush1.msra.mxu0 0.0
          %1011 = vmatprep.subr.mxu0 0.0
          %1012 = vmatpush1.msra.mxu0 0.0
          %1013 = vmatprep.subr.mxu0 0.0
          %1014 = vmatpush1.msra.mxu0 0.0
          %1015 = vmatprep.subr.mxu0 0.0
          %1016 = vmatpush1.msra.mxu0 0.0
          %1017 = vmatprep.subr.mxu0 0.0
          %1018 = vmatpush1.msra.mxu0 0.0
          %1019 = vmatprep.subr.mxu0 0.0
          %1020 = vmatpush1.msra.mxu0 0.0
          %1021 = vmatprep.subr.mxu0 0.0
          %1022 = vmatpush1.msra.mxu0 0.0
          %1023 = vmatprep.subr.mxu0 0.0
          %1024 = vmatpush1.msra.mxu0 0.0
          %1025 = vmatprep.subr.mxu0 0.0
          %1026 = vmatpush1.msra.mxu0 0.0
          %1027 = vmatprep.subr.mxu0 0.0
          %1028 = vmatpush1.msra.mxu0 0.0
          %1029 = vmatprep.subr.mxu0 0.0
          %1030 = vmatpush1.msra.mxu0 0.0
          %1031 = vmatprep.subr.mxu0 0.0
          %1032 = vmatpush1.msra.mxu0 0.0
          %1033 = vmatprep.subr.mxu0 0.0
          %1034 = vmatpush1.msra.mxu0 0.0
          %1035 = vmatprep.subr.mxu0 0.0
          %1036 = vmatpush1.msra.mxu0 0.0
          %1037 = vmatprep.subr.mxu0 0.0
          %1038 = vmatpush1.msra.mxu0 0.0
          %1039 = vmatprep.subr.mxu0 0.0
          %1040 = vmatpush1.msra.mxu0 0.0
          %1041 = vmatprep.subr.mxu0 0.0
          %1042 = vmatpush1.msra.mxu0 0.0
          %1043 = vmatprep.subr.mxu0 0.0
          %1044 = vmatpush1.msra.mxu0 0.0
          %1045 = vmatprep.subr.mxu0 0.0
          %1046 = vmatpush1.msra.mxu0 0.0
          %1047 = vmatprep.subr.mxu0 0.0
          %1048 = vmatpush1.msra.mxu0 0.0
          %1049 = vmatprep.subr.mxu0 0.0
          %1050 = vmatpush1.msra.mxu0 0.0
          %1051 = vmatprep.subr.mxu0 0.0
          %1052 = vmatpush1.msra.mxu0 0.0
          %1053 = vmatprep.subr.mxu0 0.0
          %1054 = vmatpush1.msra.mxu0 0.0
          %1055 = vmatprep.subr.mxu0 0.0
          %1056 = vmatpush1.msra.mxu0 0.0
          %1057 = vmatprep.subr.mxu0 0.0
          %1058 = vmatpush1.msra.mxu0 0.0
          %1059 = vmatprep.subr.mxu0 0.0
          %1060 = vmatpush1.msra.mxu0 0.0
          %1061 = vmatprep.subr.mxu0 0.0
          %1062 = vmatpush1.msra.mxu0 0.0
          %1063 = vmatprep.subr.mxu0 0.0
          %1064 = vmatpush1.msra.mxu0 0.0
          %1065 = vmatprep.subr.mxu0 0.0
          %1066 = vmatpush1.msra.mxu0 0.0
          %1067 = vmatprep.subr.mxu0 0.0
          %1068 = vmatpush1.msra.mxu0 0.0
          %1069 = vmatprep.subr.mxu0 0.0
          %1070 = vmatpush1.msra.mxu0 0.0
          %1071 = vmatprep.mubr.f32.mxu0 0.0
          %1072 = vmatmul.mubr.f32.gmra.mrb[0].mxu0 %v1005
          %v1073 = vpop.f32.mrb[0].mxu0
          %v1074 = vadd.f32 0.0, %v1073
          %v1075 = vpop.f32.mrb[0].mxu0
          %1076 = vdwg.mxu0
          %1078 = vset.pattern.permute.xlu0 0
          %1079 = vperm.xlu0 %1078, %v982
          %v1080 = vpop.permute.xlu0 %1079
          %v1082 = vsel %vm325, %v504, %v696
          %vm1083 = vcmask 523264
          %v1084 = vsel %vm1083, %v1082, %v888
          %vm1085 = vcmask 785408
          %v1086 = vsel %vm1085, %v1084, %v1080
          %1088 = vrot.lane.b32.xlu0 %v690, 32
          %v1089 = vpop.permute.xlu0 %1088
          %1092 = vrot.lane.b32.xlu0 %v882, 64
          %v1093 = vpop.permute.xlu0 %1092
          %1096 = vrot.lane.b32.xlu0 %v1074, 96
          %v1097 = vpop.permute.xlu0 %1096
          %v1099 = vsel %vm325, %v498, %v1089
          %v1100 = vsel %vm1083, %v1099, %v1093
          %v1101 = vsel %vm1085, %v1100, %v1097
          %v1102 = vld [vmem:[#allocation4] sm:$0xff]
          %v1103 = vmul.f32 %v1086, %v1102
          %v1104 = vadd.f32 %v1103, %v1101
          %1105 = vst [vmem:[#allocation4] sm:$0xff] %v1104
        $region52: #{tpu_custom_call.1} parent=31 // pred_fallthru
          _
        %p1106 = scmp.eq.s32.totalorder %s30, %s29
        // Predicated region
        $region53: #{tpu_custom_call.1} parent=31 // pred_check
          %p1107 = pneg %p1106
        $region54: #{tpu_custom_call.1} parent=31 // pred_check_branch
          %1109 = sbr.rel (%p1107) target = $region56
        $region55: #{tpu_custom_call.1} parent=31 // pred_region
          %s1110 = smul.u32 %s29, 8
          %v1111 = vlaneseq
          %v1112 = vshrl.u32 %v1111, 7
          %v1113 = vstv %s1110
          %v1114 = vadd.s32 %v1113, %v1112
          %s1115 = smul.u32 %s30, 8
          %v1116 = vlaneseq
          %v1117 = vand.u32 %v1116, 127
          %v1118 = vstv %s1115
          %v1119 = vadd.s32 %v1118, %v1117
          %vm1120 = vcmp.le.s32.totalorder %v1119, %v1114
          %v1121 = vld [vmem:[%s248] sm:$0xff]
          %v1122 = vmul.f32 %v1121, 0.17677669
          %v1123 = vld [vmem:[%s257] sm:$0xff]
          %v1124 = vld [vmem:[%s266] sm:$0xff]
          %vm1125 = vcmask 261120
          %v1127 = vsel %vm1125, %v1122, 0
          %v1130 = vsel %vm1125, %v1123, 0
          %1132 = vmatprep.subr.mxu0 0.0
          %1133 = vmatpush1.xpose.msra.mxu0 %v1130
          %1134 = vmatprep.subr.mxu0 0.0
          %1135 = vmatpush1.xpose.msra.mxu0 0.0
          %1136 = vmatprep.subr.mxu0 0.0
          %1137 = vmatpush1.xpose.msra.mxu0 0.0
          %1138 = vmatprep.subr.mxu0 0.0
          %1139 = vmatpush1.xpose.msra.mxu0 0.0
          %1140 = vmatprep.subr.mxu0 0.0
          %1141 = vmatpush1.xpose.msra.mxu0 0.0
          %1142 = vmatprep.subr.mxu0 0.0
          %1143 = vmatpush1.xpose.msra.mxu0 0.0
          %1144 = vmatprep.subr.mxu0 0.0
          %1145 = vmatpush1.xpose.msra.mxu0 0.0
          %1146 = vmatprep.subr.mxu0 0.0
          %1147 = vmatpush1.xpose.msra.mxu0 0.0
          %1148 = vmatprep.subr.mxu0 0.0
          %1149 = vmatpush1.xpose.msra.mxu0 0.0
          %1150 = vmatprep.subr.mxu0 0.0
          %1151 = vmatpush1.xpose.msra.mxu0 0.0
          %1152 = vmatprep.subr.mxu0 0.0
          %1153 = vmatpush1.xpose.msra.mxu0 0.0
          %1154 = vmatprep.subr.mxu0 0.0
          %1155 = vmatpush1.xpose.msra.mxu0 0.0
          %1156 = vmatprep.subr.mxu0 0.0
          %1157 = vmatpush1.xpose.msra.mxu0 0.0
          %1158 = vmatprep.subr.mxu0 0.0
          %1159 = vmatpush1.xpose.msra.mxu0 0.0
          %1160 = vmatprep.subr.mxu0 0.0
          %1161 = vmatpush1.xpose.msra.mxu0 0.0
          %1162 = vmatprep.subr.mxu0 0.0
          %1163 = vmatpush1.xpose.msra.mxu0 0.0
          %1164 = vmatprep.subr.mxu0 0.0
          %1165 = vmatpush1.xpose.msra.mxu0 0.0
          %1166 = vmatprep.subr.mxu0 0.0
          %1167 = vmatpush1.xpose.msra.mxu0 0.0
          %1168 = vmatprep.subr.mxu0 0.0
          %1169 = vmatpush1.xpose.msra.mxu0 0.0
          %1170 = vmatprep.subr.mxu0 0.0
          %1171 = vmatpush1.xpose.msra.mxu0 0.0
          %1172 = vmatprep.subr.mxu0 0.0
          %1173 = vmatpush1.xpose.msra.mxu0 0.0
          %1174 = vmatprep.subr.mxu0 0.0
          %1175 = vmatpush1.xpose.msra.mxu0 0.0
          %1176 = vmatprep.subr.mxu0 0.0
          %1177 = vmatpush1.xpose.msra.mxu0 0.0
          %1178 = vmatprep.subr.mxu0 0.0
          %1179 = vmatpush1.xpose.msra.mxu0 0.0
          %1180 = vmatprep.subr.mxu0 0.0
          %1181 = vmatpush1.xpose.msra.mxu0 0.0
          %1182 = vmatprep.subr.mxu0 0.0
          %1183 = vmatpush1.xpose.msra.mxu0 0.0
          %1184 = vmatprep.subr.mxu0 0.0
          %1185 = vmatpush1.xpose.msra.mxu0 0.0
          %1186 = vmatprep.subr.mxu0 0.0
          %1187 = vmatpush1.xpose.msra.mxu0 0.0
          %1188 = vmatprep.subr.mxu0 0.0
          %1189 = vmatpush1.xpose.msra.mxu0 0.0
          %1190 = vmatprep.subr.mxu0 0.0
          %1191 = vmatpush1.xpose.msra.mxu0 0.0
          %1192 = vmatprep.subr.mxu0 0.0
          %1193 = vmatpush1.xpose.msra.mxu0 0.0
          %1194 = vmatprep.subr.mxu0 0.0
          %1195 = vmatpush1.xpose.msra.mxu0 0.0
          %1196 = vmatprep.mubr.f32.mxu0 0.0
          %1197 = vmatmul.mubr.f32.gmra.mrb[0].mxu0 %v1127
          %v1198 = vpop.f32.mrb[0].mxu0
          %v1199 = vadd.f32 0.0, %v1198
          %v1200 = vpop.f32.mrb[0].mxu0
          %1201 = vdwg.mxu0
          %v1202 = vsel %vm1120, %v1199, -1e+30
          %v1203 = vld [vmem:[#allocation2] sm:$0xff]
          %vm1204 = vcmask 64512
          %v1205 = vsel %vm1204, %v1202, -inf
          %1206 = vmax.xlane.f32.xlu0 %v1205
          %v1207 = vpop.xlane.xlu0 %1206
          %v1208 = vmax.f32 %v1203, %v1207
          %v1209 = vsub.f32 %v1203, %v1208
          %v1210 = vmul.f32 %v1209, 1.442695
          %v1211 = vpow.pop %v1210
          %1213 = vset.pattern.permute.xlu0 0
          %1214 = vperm.xlu0 %1213, %v1208
          %v1215 = vpop.permute.xlu0 %1214
          %v1217 = vsub.f32 %v1202, %v1215
          %v1218 = vmul.f32 %v1217, 1.442695
          %v1219 = vpow.pop %v1218
          %v1220 = vld [vmem:[#allocation3] sm:$0xff]
          %v1221 = vmul.f32 %v1211, %v1220
          %v1222 = vsel %vm1204, %v1219, 0.0
          %1223 = vadd.xlane.f32.xlu0 %v1222
          %v1224 = vpop.xlane.xlu0 %1223
          %v1225 = vadd.f32 %v1221, %v1224
          %vm1226 = vcmask 7168
          %1227 = vst.msk [vmem:[#allocation3] sm:$0xff] %vm1226, %v1225
          %1228 = vst.msk [vmem:[#allocation2] sm:$0xff] %vm1226, %v1208
          %v1230 = vsel %vm1204, %v1219, 0
          %1232 = vmatprep.subr.mxu0 0.0
          %1233 = vmatpush1.msra.mxu0 %v1124
          %1234 = vmatprep.subr.mxu0 0.0
          %1235 = vmatpush1.msra.mxu0 0.0
          %1236 = vmatprep.subr.mxu0 0.0
          %1237 = vmatpush1.msra.mxu0 0.0
          %1238 = vmatprep.subr.mxu0 0.0
          %1239 = vmatpush1.msra.mxu0 0.0
          %1240 = vmatprep.subr.mxu0 0.0
          %1241 = vmatpush1.msra.mxu0 0.0
          %1242 = vmatprep.subr.mxu0 0.0
          %1243 = vmatpush1.msra.mxu0 0.0
          %1244 = vmatprep.subr.mxu0 0.0
          %1245 = vmatpush1.msra.mxu0 0.0
          %1246 = vmatprep.subr.mxu0 0.0
          %1247 = vmatpush1.msra.mxu0 0.0
          %1248 = vmatprep.subr.mxu0 0.0
          %1249 = vmatpush1.msra.mxu0 0.0
          %1250 = vmatprep.subr.mxu0 0.0
          %1251 = vmatpush1.msra.mxu0 0.0
          %1252 = vmatprep.subr.mxu0 0.0
          %1253 = vmatpush1.msra.mxu0 0.0
          %1254 = vmatprep.subr.mxu0 0.0
          %1255 = vmatpush1.msra.mxu0 0.0
          %1256 = vmatprep.subr.mxu0 0.0
          %1257 = vmatpush1.msra.mxu0 0.0
          %1258 = vmatprep.subr.mxu0 0.0
          %1259 = vmatpush1.msra.mxu0 0.0
          %1260 = vmatprep.subr.mxu0 0.0
          %1261 = vmatpush1.msra.mxu0 0.0
          %1262 = vmatprep.subr.mxu0 0.0
          %1263 = vmatpush1.msra.mxu0 0.0
          %1264 = vmatprep.subr.mxu0 0.0
          %1265 = vmatpush1.msra.mxu0 0.0
          %1266 = vmatprep.subr.mxu0 0.0
          %1267 = vmatpush1.msra.mxu0 0.0
          %1268 = vmatprep.subr.mxu0 0.0
          %1269 = vmatpush1.msra.mxu0 0.0
          %1270 = vmatprep.subr.mxu0 0.0
          %1271 = vmatpush1.msra.mxu0 0.0
          %1272 = vmatprep.subr.mxu0 0.0
          %1273 = vmatpush1.msra.mxu0 0.0
          %1274 = vmatprep.subr.mxu0 0.0
          %1275 = vmatpush1.msra.mxu0 0.0
          %1276 = vmatprep.subr.mxu0 0.0
          %1277 = vmatpush1.msra.mxu0 0.0
          %1278 = vmatprep.subr.mxu0 0.0
          %1279 = vmatpush1.msra.mxu0 0.0
          %1280 = vmatprep.subr.mxu0 0.0
          %1281 = vmatpush1.msra.mxu0 0.0
          %1282 = vmatprep.subr.mxu0 0.0
          %1283 = vmatpush1.msra.mxu0 0.0
          %1284 = vmatprep.subr.mxu0 0.0
          %1285 = vmatpush1.msra.mxu0 0.0
          %1286 = vmatprep.subr.mxu0 0.0
          %1287 = vmatpush1.msra.mxu0 0.0
          %1288 = vmatprep.subr.mxu0 0.0
          %1289 = vmatpush1.msra.mxu0 0.0
          %1290 = vmatprep.subr.mxu0 0.0
          %1291 = vmatpush1.msra.mxu0 0.0
          %1292 = vmatprep.subr.mxu0 0.0
          %1293 = vmatpush1.msra.mxu0 0.0
          %1294 = vmatprep.subr.mxu0 0.0
          %1295 = vmatpush1.msra.mxu0 0.0
          %1296 = vmatprep.mubr.f32.mxu0 0.0
          %1297 = vmatmul.mubr.f32.gmra.mrb[0].mxu0 %v1230
          %v1298 = vpop.f32.mrb[0].mxu0
          %v1299 = vadd.f32 0.0, %v1298
          %v1300 = vpop.f32.mrb[0].mxu0
          %1301 = vdwg.mxu0
          %1303 = vset.pattern.permute.xlu0 0
          %1304 = vperm.xlu0 %1303, %v1211
          %v1305 = vpop.permute.xlu0 %1304
          %v1307 = vld [vmem:[%s248] sm:$0xff]
          %v1308 = vmul.f32 %v1307, 0.17677669
          %v1309 = vld [vmem:[%s257] sm:$0xff]
          %v1310 = vld [vmem:[%s266] sm:$0xff]
          %1312 = vrot.lane.b32.xlu0 %v1308, 96
          %v1313 = vpop.permute.xlu0 %1312
          %1315 = vrot.lane.b32.xlu0 %v1309, 96
          %v1316 = vpop.permute.xlu0 %1315
          %v1317 = vsel %vm1125, %v1313, 0
          %v1319 = vsel %vm1125, %v1316, 0
          %1321 = vmatprep.subr.mxu0 0.0
          %1322 = vmatpush1.xpose.msra.mxu0 %v1319
          %1323 = vmatprep.subr.mxu0 0.0
          %1324 = vmatpush1.xpose.msra.mxu0 0.0
          %1325 = vmatprep.subr.mxu0 0.0
          %1326 = vmatpush1.xpose.msra.mxu0 0.0
          %1327 = vmatprep.subr.mxu0 0.0
          %1328 = vmatpush1.xpose.msra.mxu0 0.0
          %1329 = vmatprep.subr.mxu0 0.0
          %1330 = vmatpush1.xpose.msra.mxu0 0.0
          %1331 = vmatprep.subr.mxu0 0.0
          %1332 = vmatpush1.xpose.msra.mxu0 0.0
          %1333 = vmatprep.subr.mxu0 0.0
          %1334 = vmatpush1.xpose.msra.mxu0 0.0
          %1335 = vmatprep.subr.mxu0 0.0
          %1336 = vmatpush1.xpose.msra.mxu0 0.0
          %1337 = vmatprep.subr.mxu0 0.0
          %1338 = vmatpush1.xpose.msra.mxu0 0.0
          %1339 = vmatprep.subr.mxu0 0.0
          %1340 = vmatpush1.xpose.msra.mxu0 0.0
          %1341 = vmatprep.subr.mxu0 0.0
          %1342 = vmatpush1.xpose.msra.mxu0 0.0
          %1343 = vmatprep.subr.mxu0 0.0
          %1344 = vmatpush1.xpose.msra.mxu0 0.0
          %1345 = vmatprep.subr.mxu0 0.0
          %1346 = vmatpush1.xpose.msra.mxu0 0.0
          %1347 = vmatprep.subr.mxu0 0.0
          %1348 = vmatpush1.xpose.msra.mxu0 0.0
          %1349 = vmatprep.subr.mxu0 0.0
          %1350 = vmatpush1.xpose.msra.mxu0 0.0
          %1351 = vmatprep.subr.mxu0 0.0
          %1352 = vmatpush1.xpose.msra.mxu0 0.0
          %1353 = vmatprep.subr.mxu0 0.0
          %1354 = vmatpush1.xpose.msra.mxu0 0.0
          %1355 = vmatprep.subr.mxu0 0.0
          %1356 = vmatpush1.xpose.msra.mxu0 0.0
          %1357 = vmatprep.subr.mxu0 0.0
          %1358 = vmatpush1.xpose.msra.mxu0 0.0
          %1359 = vmatprep.subr.mxu0 0.0
          %1360 = vmatpush1.xpose.msra.mxu0 0.0
          %1361 = vmatprep.subr.mxu0 0.0
          %1362 = vmatpush1.xpose.msra.mxu0 0.0
          %1363 = vmatprep.subr.mxu0 0.0
          %1364 = vmatpush1.xpose.msra.mxu0 0.0
          %1365 = vmatprep.subr.mxu0 0.0
          %1366 = vmatpush1.xpose.msra.mxu0 0.0
          %1367 = vmatprep.subr.mxu0 0.0
          %1368 = vmatpush1.xpose.msra.mxu0 0.0
          %1369 = vmatprep.subr.mxu0 0.0
          %1370 = vmatpush1.xpose.msra.mxu0 0.0
          %1371 = vmatprep.subr.mxu0 0.0
          %1372 = vmatpush1.xpose.msra.mxu0 0.0
          %1373 = vmatprep.subr.mxu0 0.0
          %1374 = vmatpush1.xpose.msra.mxu0 0.0
          %1375 = vmatprep.subr.mxu0 0.0
          %1376 = vmatpush1.xpose.msra.mxu0 0.0
          %1377 = vmatprep.subr.mxu0 0.0
          %1378 = vmatpush1.xpose.msra.mxu0 0.0
          %1379 = vmatprep.subr.mxu0 0.0
          %1380 = vmatpush1.xpose.msra.mxu0 0.0
          %1381 = vmatprep.subr.mxu0 0.0
          %1382 = vmatpush1.xpose.msra.mxu0 0.0
          %1383 = vmatprep.subr.mxu0 0.0
          %1384 = vmatpush1.xpose.msra.mxu0 0.0
          %1385 = vmatprep.mubr.f32.mxu0 0.0
          %1386 = vmatmul.mubr.f32.gmra.mrb[0].mxu0 %v1317
          %v1387 = vpop.f32.mrb[0].mxu0
          %v1388 = vadd.f32 0.0, %v1387
          %v1389 = vpop.f32.mrb[0].mxu0
          %1390 = vdwg.mxu0
          %v1391 = vsel %vm1120, %v1388, -1e+30
          %s1392 = scalar_lea.vmem [#allocation2], 8
          %v1393 = vld [vmem:[%s1392] sm:$0xff]
          %v1394 = vsel %vm1204, %v1391, -inf
          %1395 = vmax.xlane.f32.xlu0 %v1394
          %v1396 = vpop.xlane.xlu0 %1395
          %v1397 = vmax.f32 %v1393, %v1396
          %v1398 = vsub.f32 %v1393, %v1397
          %v1399 = vmul.f32 %v1398, 1.442695
          %v1400 = vpow.pop %v1399
          %1402 = vset.pattern.permute.xlu0 0
          %1403 = vperm.xlu0 %1402, %v1397
          %v1404 = vpop.permute.xlu0 %1403
          %v1406 = vsub.f32 %v1391, %v1404
          %v1407 = vmul.f32 %v1406, 1.442695
          %v1408 = vpow.pop %v1407
          %s1409 = scalar_lea.vmem [#allocation3], 8
          %v1410 = vld [vmem:[%s1409] sm:$0xff]
          %v1411 = vmul.f32 %v1400, %v1410
          %v1412 = vsel %vm1204, %v1408, 0.0
          %1413 = vadd.xlane.f32.xlu0 %v1412
          %v1414 = vpop.xlane.xlu0 %1413
          %v1415 = vadd.f32 %v1411, %v1414
          %1416 = vst.msk [vmem:[%s1409] sm:$0xff] %vm1226, %v1415
          %1417 = vst.msk [vmem:[%s1392] sm:$0xff] %vm1226, %v1397
          %1419 = vrot.lane.b32.xlu0 %v1310, 96
          %v1420 = vpop.permute.xlu0 %1419
          %v1423 = vsel %vm1204, %v1408, 0
          %1425 = vmatprep.subr.mxu0 0.0
          %1426 = vmatpush1.msra.mxu0 %v1420
          %1427 = vmatprep.subr.mxu0 0.0
          %1428 = vmatpush1.msra.mxu0 0.0
          %1429 = vmatprep.subr.mxu0 0.0
          %1430 = vmatpush1.msra.mxu0 0.0
          %1431 = vmatprep.subr.mxu0 0.0
          %1432 = vmatpush1.msra.mxu0 0.0
          %1433 = vmatprep.subr.mxu0 0.0
          %1434 = vmatpush1.msra.mxu0 0.0
          %1435 = vmatprep.subr.mxu0 0.0
          %1436 = vmatpush1.msra.mxu0 0.0
          %1437 = vmatprep.subr.mxu0 0.0
          %1438 = vmatpush1.msra.mxu0 0.0
          %1439 = vmatprep.subr.mxu0 0.0
          %1440 = vmatpush1.msra.mxu0 0.0
          %1441 = vmatprep.subr.mxu0 0.0
          %1442 = vmatpush1.msra.mxu0 0.0
          %1443 = vmatprep.subr.mxu0 0.0
          %1444 = vmatpush1.msra.mxu0 0.0
          %1445 = vmatprep.subr.mxu0 0.0
          %1446 = vmatpush1.msra.mxu0 0.0
          %1447 = vmatprep.subr.mxu0 0.0
          %1448 = vmatpush1.msra.mxu0 0.0
          %1449 = vmatprep.subr.mxu0 0.0
          %1450 = vmatpush1.msra.mxu0 0.0
          %1451 = vmatprep.subr.mxu0 0.0
          %1452 = vmatpush1.msra.mxu0 0.0
          %1453 = vmatprep.subr.mxu0 0.0
          %1454 = vmatpush1.msra.mxu0 0.0
          %1455 = vmatprep.subr.mxu0 0.0
          %1456 = vmatpush1.msra.mxu0 0.0
          %1457 = vmatprep.subr.mxu0 0.0
          %1458 = vmatpush1.msra.mxu0 0.0
          %1459 = vmatprep.subr.mxu0 0.0
          %1460 = vmatpush1.msra.mxu0 0.0
          %1461 = vmatprep.subr.mxu0 0.0
          %1462 = vmatpush1.msra.mxu0 0.0
          %1463 = vmatprep.subr.mxu0 0.0
          %1464 = vmatpush1.msra.mxu0 0.0
          %1465 = vmatprep.subr.mxu0 0.0
          %1466 = vmatpush1.msra.mxu0 0.0
          %1467 = vmatprep.subr.mxu0 0.0
          %1468 = vmatpush1.msra.mxu0 0.0
          %1469 = vmatprep.subr.mxu0 0.0
          %1470 = vmatpush1.msra.mxu0 0.0
          %1471 = vmatprep.subr.mxu0 0.0
          %1472 = vmatpush1.msra.mxu0 0.0
          %1473 = vmatprep.subr.mxu0 0.0
          %1474 = vmatpush1.msra.mxu0 0.0
          %1475 = vmatprep.subr.mxu0 0.0
          %1476 = vmatpush1.msra.mxu0 0.0
          %1477 = vmatprep.subr.mxu0 0.0
          %1478 = vmatpush1.msra.mxu0 0.0
          %1479 = vmatprep.subr.mxu0 0.0
          %1480 = vmatpush1.msra.mxu0 0.0
          %1481 = vmatprep.subr.mxu0 0.0
          %1482 = vmatpush1.msra.mxu0 0.0
          %1483 = vmatprep.subr.mxu0 0.0
          %1484 = vmatpush1.msra.mxu0 0.0
          %1485 = vmatprep.subr.mxu0 0.0
          %1486 = vmatpush1.msra.mxu0 0.0
          %1487 = vmatprep.subr.mxu0 0.0
          %1488 = vmatpush1.msra.mxu0 0.0
          %1489 = vmatprep.mubr.f32.mxu0 0.0
          %1490 = vmatmul.mubr.f32.gmra.mrb[0].mxu0 %v1423
          %v1491 = vpop.f32.mrb[0].mxu0
          %v1492 = vadd.f32 0.0, %v1491
          %v1493 = vpop.f32.mrb[0].mxu0
          %1494 = vdwg.mxu0
          %1496 = vset.pattern.permute.xlu0 0
          %1497 = vperm.xlu0 %1496, %v1400
          %v1498 = vpop.permute.xlu0 %1497
          %v1500 = vld [vmem:[%s248] sm:$0xff]
          %v1501 = vmul.f32 %v1500, 0.17677669
          %v1502 = vld [vmem:[%s257] sm:$0xff]
          %v1503 = vld [vmem:[%s266] sm:$0xff]
          %1505 = vrot.lane.b32.xlu0 %v1501, 64
          %v1506 = vpop.permute.xlu0 %1505
          %1508 = vrot.lane.b32.xlu0 %v1502, 64
          %v1509 = vpop.permute.xlu0 %1508
          %v1510 = vsel %vm1125, %v1506, 0
          %v1512 = vsel %vm1125, %v1509, 0
          %1514 = vmatprep.subr.mxu0 0.0
          %1515 = vmatpush1.xpose.msra.mxu0 %v1512
          %1516 = vmatprep.subr.mxu0 0.0
          %1517 = vmatpush1.xpose.msra.mxu0 0.0
          %1518 = vmatprep.subr.mxu0 0.0
          %1519 = vmatpush1.xpose.msra.mxu0 0.0
          %1520 = vmatprep.subr.mxu0 0.0
          %1521 = vmatpush1.xpose.msra.mxu0 0.0
          %1522 = vmatprep.subr.mxu0 0.0
          %1523 = vmatpush1.xpose.msra.mxu0 0.0
          %1524 = vmatprep.subr.mxu0 0.0
          %1525 = vmatpush1.xpose.msra.mxu0 0.0
          %1526 = vmatprep.subr.mxu0 0.0
          %1527 = vmatpush1.xpose.msra.mxu0 0.0
          %1528 = vmatprep.subr.mxu0 0.0
          %1529 = vmatpush1.xpose.msra.mxu0 0.0
          %1530 = vmatprep.subr.mxu0 0.0
          %1531 = vmatpush1.xpose.msra.mxu0 0.0
          %1532 = vmatprep.subr.mxu0 0.0
          %1533 = vmatpush1.xpose.msra.mxu0 0.0
          %1534 = vmatprep.subr.mxu0 0.0
          %1535 = vmatpush1.xpose.msra.mxu0 0.0
          %1536 = vmatprep.subr.mxu0 0.0
          %1537 = vmatpush1.xpose.msra.mxu0 0.0
          %1538 = vmatprep.subr.mxu0 0.0
          %1539 = vmatpush1.xpose.msra.mxu0 0.0
          %1540 = vmatprep.subr.mxu0 0.0
          %1541 = vmatpush1.xpose.msra.mxu0 0.0
          %1542 = vmatprep.subr.mxu0 0.0
          %1543 = vmatpush1.xpose.msra.mxu0 0.0
          %1544 = vmatprep.subr.mxu0 0.0
          %1545 = vmatpush1.xpose.msra.mxu0 0.0
          %1546 = vmatprep.subr.mxu0 0.0
          %1547 = vmatpush1.xpose.msra.mxu0 0.0
          %1548 = vmatprep.subr.mxu0 0.0
          %1549 = vmatpush1.xpose.msra.mxu0 0.0
          %1550 = vmatprep.subr.mxu0 0.0
          %1551 = vmatpush1.xpose.msra.mxu0 0.0
          %1552 = vmatprep.subr.mxu0 0.0
          %1553 = vmatpush1.xpose.msra.mxu0 0.0
          %1554 = vmatprep.subr.mxu0 0.0
          %1555 = vmatpush1.xpose.msra.mxu0 0.0
          %1556 = vmatprep.subr.mxu0 0.0
          %1557 = vmatpush1.xpose.msra.mxu0 0.0
          %1558 = vmatprep.subr.mxu0 0.0
          %1559 = vmatpush1.xpose.msra.mxu0 0.0
          %1560 = vmatprep.subr.mxu0 0.0
          %1561 = vmatpush1.xpose.msra.mxu0 0.0
          %1562 = vmatprep.subr.mxu0 0.0
          %1563 = vmatpush1.xpose.msra.mxu0 0.0
          %1564 = vmatprep.subr.mxu0 0.0
          %1565 = vmatpush1.xpose.msra.mxu0 0.0
          %1566 = vmatprep.subr.mxu0 0.0
          %1567 = vmatpush1.xpose.msra.mxu0 0.0
          %1568 = vmatprep.subr.mxu0 0.0
          %1569 = vmatpush1.xpose.msra.mxu0 0.0
          %1570 = vmatprep.subr.mxu0 0.0
          %1571 = vmatpush1.xpose.msra.mxu0 0.0
          %1572 = vmatprep.subr.mxu0 0.0
          %1573 = vmatpush1.xpose.msra.mxu0 0.0
          %1574 = vmatprep.subr.mxu0 0.0
          %1575 = vmatpush1.xpose.msra.mxu0 0.0
          %1576 = vmatprep.subr.mxu0 0.0
          %1577 = vmatpush1.xpose.msra.mxu0 0.0
          %1578 = vmatprep.mubr.f32.mxu0 0.0
          %1579 = vmatmul.mubr.f32.gmra.mrb[0].mxu0 %v1510
          %v1580 = vpop.f32.mrb[0].mxu0
          %v1581 = vadd.f32 0.0, %v1580
          %v1582 = vpop.f32.mrb[0].mxu0
          %1583 = vdwg.mxu0
          %v1584 = vsel %vm1120, %v1581, -1e+30
          %s1585 = scalar_lea.vmem [#allocation2], 16
          %v1586 = vld [vmem:[%s1585] sm:$0xff]
          %v1587 = vsel %vm1204, %v1584, -inf
          %1588 = vmax.xlane.f32.xlu0 %v1587
          %v1589 = vpop.xlane.xlu0 %1588
          %v1590 = vmax.f32 %v1586, %v1589
          %v1591 = vsub.f32 %v1586, %v1590
          %v1592 = vmul.f32 %v1591, 1.442695
          %v1593 = vpow.pop %v1592
          %1595 = vset.pattern.permute.xlu0 0
          %1596 = vperm.xlu0 %1595, %v1590
          %v1597 = vpop.permute.xlu0 %1596
          %v1599 = vsub.f32 %v1584, %v1597
          %v1600 = vmul.f32 %v1599, 1.442695
          %v1601 = vpow.pop %v1600
          %s1602 = scalar_lea.vmem [#allocation3], 16
          %v1603 = vld [vmem:[%s1602] sm:$0xff]
          %v1604 = vmul.f32 %v1593, %v1603
          %v1605 = vsel %vm1204, %v1601, 0.0
          %1606 = vadd.xlane.f32.xlu0 %v1605
          %v1607 = vpop.xlane.xlu0 %1606
          %v1608 = vadd.f32 %v1604, %v1607
          %1609 = vst.msk [vmem:[%s1602] sm:$0xff] %vm1226, %v1608
          %1610 = vst.msk [vmem:[%s1585] sm:$0xff] %vm1226, %v1590
          %1612 = vrot.lane.b32.xlu0 %v1503, 64
          %v1613 = vpop.permute.xlu0 %1612
          %v1616 = vsel %vm1204, %v1601, 0
          %1618 = vmatprep.subr.mxu0 0.0
          %1619 = vmatpush1.msra.mxu0 %v1613
          %1620 = vmatprep.subr.mxu0 0.0
          %1621 = vmatpush1.msra.mxu0 0.0
          %1622 = vmatprep.subr.mxu0 0.0
          %1623 = vmatpush1.msra.mxu0 0.0
          %1624 = vmatprep.subr.mxu0 0.0
          %1625 = vmatpush1.msra.mxu0 0.0
          %1626 = vmatprep.subr.mxu0 0.0
          %1627 = vmatpush1.msra.mxu0 0.0
          %1628 = vmatprep.subr.mxu0 0.0
          %1629 = vmatpush1.msra.mxu0 0.0
          %1630 = vmatprep.subr.mxu0 0.0
          %1631 = vmatpush1.msra.mxu0 0.0
          %1632 = vmatprep.subr.mxu0 0.0
          %1633 = vmatpush1.msra.mxu0 0.0
          %1634 = vmatprep.subr.mxu0 0.0
          %1635 = vmatpush1.msra.mxu0 0.0
          %1636 = vmatprep.subr.mxu0 0.0
          %1637 = vmatpush1.msra.mxu0 0.0
          %1638 = vmatprep.subr.mxu0 0.0
          %1639 = vmatpush1.msra.mxu0 0.0
          %1640 = vmatprep.subr.mxu0 0.0
          %1641 = vmatpush1.msra.mxu0 0.0
          %1642 = vmatprep.subr.mxu0 0.0
          %1643 = vmatpush1.msra.mxu0 0.0
          %1644 = vmatprep.subr.mxu0 0.0
          %1645 = vmatpush1.msra.mxu0 0.0
          %1646 = vmatprep.subr.mxu0 0.0
          %1647 = vmatpush1.msra.mxu0 0.0
          %1648 = vmatprep.subr.mxu0 0.0
          %1649 = vmatpush1.msra.mxu0 0.0
          %1650 = vmatprep.subr.mxu0 0.0
          %1651 = vmatpush1.msra.mxu0 0.0
          %1652 = vmatprep.subr.mxu0 0.0
          %1653 = vmatpush1.msra.mxu0 0.0
          %1654 = vmatprep.subr.mxu0 0.0
          %1655 = vmatpush1.msra.mxu0 0.0
          %1656 = vmatprep.subr.mxu0 0.0
          %1657 = vmatpush1.msra.mxu0 0.0
          %1658 = vmatprep.subr.mxu0 0.0
          %1659 = vmatpush1.msra.mxu0 0.0
          %1660 = vmatprep.subr.mxu0 0.0
          %1661 = vmatpush1.msra.mxu0 0.0
          %1662 = vmatprep.subr.mxu0 0.0
          %1663 = vmatpush1.msra.mxu0 0.0
          %1664 = vmatprep.subr.mxu0 0.0
          %1665 = vmatpush1.msra.mxu0 0.0
          %1666 = vmatprep.subr.mxu0 0.0
          %1667 = vmatpush1.msra.mxu0 0.0
          %1668 = vmatprep.subr.mxu0 0.0
          %1669 = vmatpush1.msra.mxu0 0.0
          %1670 = vmatprep.subr.mxu0 0.0
          %1671 = vmatpush1.msra.mxu0 0.0
          %1672 = vmatprep.subr.mxu0 0.0
          %1673 = vmatpush1.msra.mxu0 0.0
          %1674 = vmatprep.subr.mxu0 0.0
          %1675 = vmatpush1.msra.mxu0 0.0
          %1676 = vmatprep.subr.mxu0 0.0
          %1677 = vmatpush1.msra.mxu0 0.0
          %1678 = vmatprep.subr.mxu0 0.0
          %1679 = vmatpush1.msra.mxu0 0.0
          %1680 = vmatprep.subr.mxu0 0.0
          %1681 = vmatpush1.msra.mxu0 0.0
          %1682 = vmatprep.mubr.f32.mxu0 0.0
          %1683 = vmatmul.mubr.f32.gmra.mrb[0].mxu0 %v1616
          %v1684 = vpop.f32.mrb[0].mxu0
          %v1685 = vadd.f32 0.0, %v1684
          %v1686 = vpop.f32.mrb[0].mxu0
          %1687 = vdwg.mxu0
          %1689 = vset.pattern.permute.xlu0 0
          %1690 = vperm.xlu0 %1689, %v1593
          %v1691 = vpop.permute.xlu0 %1690
          %v1693 = vld [vmem:[%s248] sm:$0xff]
          %v1694 = vmul.f32 %v1693, 0.17677669
          %v1695 = vld [vmem:[%s257] sm:$0xff]
          %v1696 = vld [vmem:[%s266] sm:$0xff]
          %1698 = vrot.lane.b32.xlu0 %v1694, 32
          %v1699 = vpop.permute.xlu0 %1698
          %1701 = vrot.lane.b32.xlu0 %v1695, 32
          %v1702 = vpop.permute.xlu0 %1701
          %v1703 = vsel %vm1125, %v1699, 0
          %v1705 = vsel %vm1125, %v1702, 0
          %1707 = vmatprep.subr.mxu0 0.0
          %1708 = vmatpush1.xpose.msra.mxu0 %v1705
          %1709 = vmatprep.subr.mxu0 0.0
          %1710 = vmatpush1.xpose.msra.mxu0 0.0
          %1711 = vmatprep.subr.mxu0 0.0
          %1712 = vmatpush1.xpose.msra.mxu0 0.0
          %1713 = vmatprep.subr.mxu0 0.0
          %1714 = vmatpush1.xpose.msra.mxu0 0.0
          %1715 = vmatprep.subr.mxu0 0.0
          %1716 = vmatpush1.xpose.msra.mxu0 0.0
          %1717 = vmatprep.subr.mxu0 0.0
          %1718 = vmatpush1.xpose.msra.mxu0 0.0
          %1719 = vmatprep.subr.mxu0 0.0
          %1720 = vmatpush1.xpose.msra.mxu0 0.0
          %1721 = vmatprep.subr.mxu0 0.0
          %1722 = vmatpush1.xpose.msra.mxu0 0.0
          %1723 = vmatprep.subr.mxu0 0.0
          %1724 = vmatpush1.xpose.msra.mxu0 0.0
          %1725 = vmatprep.subr.mxu0 0.0
          %1726 = vmatpush1.xpose.msra.mxu0 0.0
          %1727 = vmatprep.subr.mxu0 0.0
          %1728 = vmatpush1.xpose.msra.mxu0 0.0
          %1729 = vmatprep.subr.mxu0 0.0
          %1730 = vmatpush1.xpose.msra.mxu0 0.0
          %1731 = vmatprep.subr.mxu0 0.0
          %1732 = vmatpush1.xpose.msra.mxu0 0.0
          %1733 = vmatprep.subr.mxu0 0.0
          %1734 = vmatpush1.xpose.msra.mxu0 0.0
          %1735 = vmatprep.subr.mxu0 0.0
          %1736 = vmatpush1.xpose.msra.mxu0 0.0
          %1737 = vmatprep.subr.mxu0 0.0
          %1738 = vmatpush1.xpose.msra.mxu0 0.0
          %1739 = vmatprep.subr.mxu0 0.0
          %1740 = vmatpush1.xpose.msra.mxu0 0.0
          %1741 = vmatprep.subr.mxu0 0.0
          %1742 = vmatpush1.xpose.msra.mxu0 0.0
          %1743 = vmatprep.subr.mxu0 0.0
          %1744 = vmatpush1.xpose.msra.mxu0 0.0
          %1745 = vmatprep.subr.mxu0 0.0
          %1746 = vmatpush1.xpose.msra.mxu0 0.0
          %1747 = vmatprep.subr.mxu0 0.0
          %1748 = vmatpush1.xpose.msra.mxu0 0.0
          %1749 = vmatprep.subr.mxu0 0.0
          %1750 = vmatpush1.xpose.msra.mxu0 0.0
          %1751 = vmatprep.subr.mxu0 0.0
          %1752 = vmatpush1.xpose.msra.mxu0 0.0
          %1753 = vmatprep.subr.mxu0 0.0
          %1754 = vmatpush1.xpose.msra.mxu0 0.0
          %1755 = vmatprep.subr.mxu0 0.0
          %1756 = vmatpush1.xpose.msra.mxu0 0.0
          %1757 = vmatprep.subr.mxu0 0.0
          %1758 = vmatpush1.xpose.msra.mxu0 0.0
          %1759 = vmatprep.subr.mxu0 0.0
          %1760 = vmatpush1.xpose.msra.mxu0 0.0
          %1761 = vmatprep.subr.mxu0 0.0
          %1762 = vmatpush1.xpose.msra.mxu0 0.0
          %1763 = vmatprep.subr.mxu0 0.0
          %1764 = vmatpush1.xpose.msra.mxu0 0.0
          %1765 = vmatprep.subr.mxu0 0.0
          %1766 = vmatpush1.xpose.msra.mxu0 0.0
          %1767 = vmatprep.subr.mxu0 0.0
          %1768 = vmatpush1.xpose.msra.mxu0 0.0
          %1769 = vmatprep.subr.mxu0 0.0
          %1770 = vmatpush1.xpose.msra.mxu0 0.0
          %1771 = vmatprep.mubr.f32.mxu0 0.0
          %1772 = vmatmul.mubr.f32.gmra.mrb[0].mxu0 %v1703
          %v1773 = vpop.f32.mrb[0].mxu0
          %v1774 = vadd.f32 0.0, %v1773
          %v1775 = vpop.f32.mrb[0].mxu0
          %1776 = vdwg.mxu0
          %v1777 = vsel %vm1120, %v1774, -1e+30
          %s1778 = scalar_lea.vmem [#allocation2], 24
          %v1779 = vld [vmem:[%s1778] sm:$0xff]
          %v1780 = vsel %vm1204, %v1777, -inf
          %1781 = vmax.xlane.f32.xlu0 %v1780
          %v1782 = vpop.xlane.xlu0 %1781
          %v1783 = vmax.f32 %v1779, %v1782
          %v1784 = vsub.f32 %v1779, %v1783
          %v1785 = vmul.f32 %v1784, 1.442695
          %v1786 = vpow.pop %v1785
          %1788 = vset.pattern.permute.xlu0 0
          %1789 = vperm.xlu0 %1788, %v1783
          %v1790 = vpop.permute.xlu0 %1789
          %v1792 = vsub.f32 %v1777, %v1790
          %v1793 = vmul.f32 %v1792, 1.442695
          %v1794 = vpow.pop %v1793
          %s1795 = scalar_lea.vmem [#allocation3], 24
          %v1796 = vld [vmem:[%s1795] sm:$0xff]
          %v1797 = vmul.f32 %v1786, %v1796
          %v1798 = vsel %vm1204, %v1794, 0.0
          %1799 = vadd.xlane.f32.xlu0 %v1798
          %v1800 = vpop.xlane.xlu0 %1799
          %v1801 = vadd.f32 %v1797, %v1800
          %1802 = vst.msk [vmem:[%s1795] sm:$0xff] %vm1226, %v1801
          %1803 = vst.msk [vmem:[%s1778] sm:$0xff] %vm1226, %v1783
          %1805 = vrot.lane.b32.xlu0 %v1696, 32
          %v1806 = vpop.permute.xlu0 %1805
          %v1809 = vsel %vm1204, %v1794, 0
          %1811 = vmatprep.subr.mxu0 0.0
          %1812 = vmatpush1.msra.mxu0 %v1806
          %1813 = vmatprep.subr.mxu0 0.0
          %1814 = vmatpush1.msra.mxu0 0.0
          %1815 = vmatprep.subr.mxu0 0.0
          %1816 = vmatpush1.msra.mxu0 0.0
          %1817 = vmatprep.subr.mxu0 0.0
          %1818 = vmatpush1.msra.mxu0 0.0
          %1819 = vmatprep.subr.mxu0 0.0
          %1820 = vmatpush1.msra.mxu0 0.0
          %1821 = vmatprep.subr.mxu0 0.0
          %1822 = vmatpush1.msra.mxu0 0.0
          %1823 = vmatprep.subr.mxu0 0.0
          %1824 = vmatpush1.msra.mxu0 0.0
          %1825 = vmatprep.subr.mxu0 0.0
          %1826 = vmatpush1.msra.mxu0 0.0
          %1827 = vmatprep.subr.mxu0 0.0
          %1828 = vmatpush1.msra.mxu0 0.0
          %1829 = vmatprep.subr.mxu0 0.0
          %1830 = vmatpush1.msra.mxu0 0.0
          %1831 = vmatprep.subr.mxu0 0.0
          %1832 = vmatpush1.msra.mxu0 0.0
          %1833 = vmatprep.subr.mxu0 0.0
          %1834 = vmatpush1.msra.mxu0 0.0
          %1835 = vmatprep.subr.mxu0 0.0
          %1836 = vmatpush1.msra.mxu0 0.0
          %1837 = vmatprep.subr.mxu0 0.0
          %1838 = vmatpush1.msra.mxu0 0.0
          %1839 = vmatprep.subr.mxu0 0.0
          %1840 = vmatpush1.msra.mxu0 0.0
          %1841 = vmatprep.subr.mxu0 0.0
          %1842 = vmatpush1.msra.mxu0 0.0
          %1843 = vmatprep.subr.mxu0 0.0
          %1844 = vmatpush1.msra.mxu0 0.0
          %1845 = vmatprep.subr.mxu0 0.0
          %1846 = vmatpush1.msra.mxu0 0.0
          %1847 = vmatprep.subr.mxu0 0.0
          %1848 = vmatpush1.msra.mxu0 0.0
          %1849 = vmatprep.subr.mxu0 0.0
          %1850 = vmatpush1.msra.mxu0 0.0
          %1851 = vmatprep.subr.mxu0 0.0
          %1852 = vmatpush1.msra.mxu0 0.0
          %1853 = vmatprep.subr.mxu0 0.0
          %1854 = vmatpush1.msra.mxu0 0.0
          %1855 = vmatprep.subr.mxu0 0.0
          %1856 = vmatpush1.msra.mxu0 0.0
          %1857 = vmatprep.subr.mxu0 0.0
          %1858 = vmatpush1.msra.mxu0 0.0
          %1859 = vmatprep.subr.mxu0 0.0
          %1860 = vmatpush1.msra.mxu0 0.0
          %1861 = vmatprep.subr.mxu0 0.0
          %1862 = vmatpush1.msra.mxu0 0.0
          %1863 = vmatprep.subr.mxu0 0.0
          %1864 = vmatpush1.msra.mxu0 0.0
          %1865 = vmatprep.subr.mxu0 0.0
          %1866 = vmatpush1.msra.mxu0 0.0
          %1867 = vmatprep.subr.mxu0 0.0
          %1868 = vmatpush1.msra.mxu0 0.0
          %1869 = vmatprep.subr.mxu0 0.0
          %1870 = vmatpush1.msra.mxu0 0.0
          %1871 = vmatprep.subr.mxu0 0.0
          %1872 = vmatpush1.msra.mxu0 0.0
          %1873 = vmatprep.subr.mxu0 0.0
          %1874 = vmatpush1.msra.mxu0 0.0
          %1875 = vmatprep.mubr.f32.mxu0 0.0
          %1876 = vmatmul.mubr.f32.gmra.mrb[0].mxu0 %v1809
          %v1877 = vpop.f32.mrb[0].mxu0
          %v1878 = vadd.f32 0.0, %v1877
          %v1879 = vpop.f32.mrb[0].mxu0
          %1880 = vdwg.mxu0
          %1882 = vset.pattern.permute.xlu0 0
          %1883 = vperm.xlu0 %1882, %v1786
          %v1884 = vpop.permute.xlu0 %1883
          %v1886 = vsel %vm1125, %v1305, %v1498
          %vm1887 = vcmask 523264
          %v1888 = vsel %vm1887, %v1886, %v1691
          %vm1889 = vcmask 785408
          %v1890 = vsel %vm1889, %v1888, %v1884
          %1892 = vrot.lane.b32.xlu0 %v1492, 32
          %v1893 = vpop.permute.xlu0 %1892
          %1896 = vrot.lane.b32.xlu0 %v1685, 64
          %v1897 = vpop.permute.xlu0 %1896
          %1900 = vrot.lane.b32.xlu0 %v1878, 96
          %v1901 = vpop.permute.xlu0 %1900
          %v1903 = vsel %vm1125, %v1299, %v1893
          %v1904 = vsel %vm1887, %v1903, %v1897
          %v1905 = vsel %vm1889, %v1904, %v1901
          %v1906 = vld [vmem:[#allocation4] sm:$0xff]
          %v1907 = vmul.f32 %v1890, %v1906
          %v1908 = vadd.f32 %v1907, %v1905
          %1909 = vst [vmem:[#allocation4] sm:$0xff] %v1908
        $region56: #{tpu_custom_call.1} parent=31 // pred_fallthru
          _
        // Predicated region
        $region57: #{tpu_custom_call.1} parent=31 // pred_check
          %p1910 = pneg %p303
        $region58: #{tpu_custom_call.1} parent=31 // pred_check_branch
          %1912 = sbr.rel (%p1910) target = $region60
        $region59: #{tpu_custom_call.1} parent=31 // pred_region
          %v1913 = vld [vmem:[#allocation3] sm:$0xff]
          %v1914 = vrcp.pop %v1913
          %v1915 = vmul.f32 1.0, %v1914
          %1917 = vset.pattern.permute.xlu0 0
          %1918 = vperm.xlu0 %1917, %v1915
          %v1919 = vpop.permute.xlu0 %1918
          %s1921 = scalar_lea.vmem [#allocation3], 8
          %v1922 = vld [vmem:[%s1921] sm:$0xff]
          %v1923 = vrcp.pop %v1922
          %v1924 = vmul.f32 1.0, %v1923
          %1926 = vset.pattern.permute.xlu0 0
          %1927 = vperm.xlu0 %1926, %v1924
          %v1928 = vpop.permute.xlu0 %1927
          %s1930 = scalar_lea.vmem [#allocation3], 16
          %v1931 = vld [vmem:[%s1930] sm:$0xff]
          %v1932 = vrcp.pop %v1931
          %v1933 = vmul.f32 1.0, %v1932
          %1935 = vset.pattern.permute.xlu0 0
          %1936 = vperm.xlu0 %1935, %v1933
          %v1937 = vpop.permute.xlu0 %1936
          %s1939 = scalar_lea.vmem [#allocation3], 24
          %v1940 = vld [vmem:[%s1939] sm:$0xff]
          %v1941 = vrcp.pop %v1940
          %v1942 = vmul.f32 1.0, %v1941
          %1944 = vset.pattern.permute.xlu0 0
          %1945 = vperm.xlu0 %1944, %v1942
          %v1946 = vpop.permute.xlu0 %1945
          %vm1948 = vcmask 261120
          %v1949 = vsel %vm1948, %v1919, %v1928
          %vm1950 = vcmask 523264
          %v1951 = vsel %vm1950, %v1949, %v1937
          %vm1952 = vcmask 785408
          %v1953 = vsel %vm1952, %v1951, %v1946
          %v1954 = vld [vmem:[#allocation4] sm:$0xff]
          %v1955 = vmul.f32 %v1954, %v1953
          %1956 = vst [vmem:[%s298] sm:$0xff] %v1955
        $region60: #{tpu_custom_call.1} parent=31 // pred_fallthru
          _
        %s1957 = sand.u32 %s144, 1
        %s1958 = scalar_lea.sflag [#allocation7], %s1957
        %s1959 = sand.u32 %s144, 1
        %s1960 = smul.addr %s1959, 8
        %s1961 = scalar_lea.vmem [#allocation11], %s1960
        // Predicated region
        $region61: #{tpu_custom_call.1} parent=31 // pred_check
          %p1962 = pneg %p154
        $region62: #{tpu_custom_call.1} parent=31 // pred_check_branch
          %1964 = sbr.rel (%p1962) target = $region64
        $region63: #{tpu_custom_call.1} parent=31 // pred_region
          %s1966 = ssub.s32 128, 128
          %1967 = vsyncadd %s1958, %s1966
          %s1968 = sadd.s32 %s29, %s28
          %s1969 = smul.addr %s1968, 128
          %s1970 = scalar_lea.hbm %s3, %s1969
          %s1972 = sshll.u32 %s1961, 4
          %s1973 = int_to_ptr.vmem [resolvable:$true] %s1972
          %1975 = dma.vmem_to_hbm [thread:$0]  %s1973, 128, %s1970, %s1958
        $region64: #{tpu_custom_call.1} parent=31 // pred_fallthru
          _
      $region32: #{tpu_custom_call.1} parent=5 // pred_fallthru
        _
      %p1976 = scmp.le.s32.totalorder 2, %s18
      // Predicated region
      $region65: #{tpu_custom_call.1} parent=5 // pred_check
        %p1977 = pneg %p1976
      $region66: #{tpu_custom_call.1} parent=5 // pred_check_branch
        %1979 = sbr.rel (%p1977) target = $region68
      $region67: #{tpu_custom_call.1} parent=5 // pred_region
        %s1980 = ssub.s32 %s18, 2
        // Predicated region
        $region69: #{tpu_custom_call.1} parent=67 // pred_check
          %p1981 = pneg %p160
        $region70: #{tpu_custom_call.1} parent=67 // pred_check_branch
          %1983 = sbr.rel (%p1981) target = $region72
        $region71: #{tpu_custom_call.1} parent=67 // pred_region
          %s1984 = sand.u32 %s145, 1
          %s1985 = scalar_lea.sflag [#allocation7], %s1984
          %s1986 = sand.u32 %s145, 1
          %s1987 = smul.addr %s1986, 8
          %s1988 = scalar_lea.vmem [#allocation11], %s1987
          %1989 = dma.done %s1985, 128
        $region72: #{tpu_custom_call.1} parent=67 // pred_fallthru
          _
      $region68: #{tpu_custom_call.1} parent=5 // pred_fallthru
        _
    $region6: #{tpu_custom_call.1} parent=1 // loop_footer
      %s22 = sadd.s32 1, %s18
    $region7: #{tpu_custom_call.1} parent=1 // loop_footer_branch
      %17 = sbr.rel target = $region3
    $region8: #{tpu_custom_call.1} parent=1 // loop_exit
      _
    %1990 = vsyncpa [#allocation6], 1
    %s1991 = scalar_lea.sflag [#allocation6], 1
    %1992 = vsyncpa %s1991, 1
    %1993 = vsyncpa [#allocation9], 1
    %s1994 = scalar_lea.sflag [#allocation9], 1
    %1995 = vsyncpa %s1994, 1
    %1996 = vsyncpa [#allocation7], 1
    %s1997 = scalar_lea.sflag [#allocation7], 1
    %1998 = vsyncpa %s1997, 1

</llo_original>
